<compile_context>
chip_gen: v7x
topology: tpu7x:2x2x1
jax: 0.10.0
libtpu: 0.0.40
codegen_flags: <defaults>
</compile_context>

<pallas_src>
import functools

import jax
import jax.numpy as jnp
from jax import lax
from jax.experimental import pallas as pl
from jax.experimental.pallas import tpu as pltpu


def _lstm_predictor_kernel(gx_ref,      # (T, Bb, 4H)  precomputed x @ Wih0 + b0
                           whh0_ref,    # (H, 4H)
                           w1_ref,      # (2H, 4H)     concat([Wih1, Whh1], axis=0)
                           b1_ref,      # (1, 4H)
                           wout_ref,    # (H, P)
                           bout_ref,    # (1, P)
                           out_ref,     # (T, Bb, P)
                           h1_seq,      # VMEM scratch (T, Bb, H)
                           *, hidden_size):
    H = hidden_size
    T, Bb, _ = gx_ref.shape
    P = wout_ref.shape[1]
    f32 = jnp.float32

    # Loop-invariant loads / broadcasts, hoisted out of the time loop.
    whh0 = whh0_ref[...]
    w1 = w1_ref[...]
    b1 = jnp.broadcast_to(b1_ref[...], (Bb, 4 * H))

    def gate_act(gates, c_prev):
        # PyTorch gate order [i, f, g, o]; static lane slices of the 4H vreg.
        i = jax.nn.sigmoid(gates[:, 0 * H:1 * H])
        f = jax.nn.sigmoid(gates[:, 1 * H:2 * H])
        g = jnp.tanh(gates[:, 2 * H:3 * H])
        o = jax.nn.sigmoid(gates[:, 3 * H:4 * H])
        c_new = f * c_prev + i * g
        h_new = o * jnp.tanh(c_new)
        return h_new, c_new

    def body(t, carry):
        h0, c0, h1, c1 = carry
        # Layer 0: input projection precomputed -> only the recurrent matmul here.
        gates0 = gx_ref[t] + jnp.dot(h0, whh0, preferred_element_type=f32)
        h0n, c0n = gate_act(gates0, c0)
        # Layer 1: fused input + recurrent weights (single MXU push per step).
        xh = jnp.concatenate([h0n, h1], axis=-1)          # (Bb, 2H)
        gates1 = jnp.dot(xh, w1, preferred_element_type=f32) + b1
        h1n, c1n = gate_act(gates1, c1)
        h1_seq[t] = h1n
        return (h0n, c0n, h1n, c1n)

    z = jnp.zeros((Bb, H), f32)
    lax.fori_loop(0, T, body, (z, z, z, z), unroll=True)

    # Output projection + square + per-sequence normalization, once, in bulk.
    h1_all = h1_seq[...].reshape(T * Bb, H)
    out = jnp.dot(h1_all, wout_ref[...], preferred_element_type=f32) + bout_ref[...]
    inten = (out * out).reshape(T, Bb, P)
    s = jnp.sum(inten, axis=(0, 2), keepdims=True)        # (1, Bb, 1)
    out_ref[...] = inten * (jnp.float32(T) / (s + 1e-8))


def lstm_predictor_forward(x, params, hidden_size, *, block_b=None):
    """x: (B, T, ports+1) or (T, ports+1) float32 -> intensity (B, T, ports)."""
    wih0, whh0, b0, wih1, whh1, b1, wout, bout = params
    is_batch = x.ndim == 3
    if not is_batch:
        x = x[None]
    B, T, D_in = x.shape
    H = hidden_size
    P = wout.shape[1]

    x_tbd = jnp.transpose(x.astype(jnp.float32), (1, 0, 2))      # (T, B, D_in)

    # Hoisted layer-0 input projection: one (T*B, D_in) @ (D_in, 4H) matmul.
    gx = (jnp.einsum("tbd,dg->tbg", x_tbd, wih0) + b0).astype(jnp.float32)

    # Fused layer-1 weights.
    w1 = jnp.concatenate([wih1, whh1], axis=0)                   # (2H, 4H)

    # Parallel batch blocking. For v7x, pick block_b <= B/2 to engage both TCs.
    if block_b is None:
        block_b = 8 if (B % 8 == 0) else B
    assert B % block_b == 0, "B must be divisible by block_b"
    grid = (B // block_b,)

    kernel = functools.partial(_lstm_predictor_kernel, hidden_size=H)

    def full_spec(shape):
        n = len(shape)
        return pl.BlockSpec(shape, lambda b, n=n: (0,) * n)

    out_tbp = pl.pallas_call(
        kernel,
        out_shape=jax.ShapeDtypeStruct((T, B, P), jnp.float32),
        grid_spec=pltpu.PrefetchScalarGridSpec(
            num_scalar_prefetch=0,
            grid=grid,
            in_specs=[
                pl.BlockSpec((T, block_b, 4 * H), lambda b: (0, b, 0)),  # gx
                full_spec(whh0.shape),
                full_spec(w1.shape),
                full_spec(b1.shape),
                full_spec(wout.shape),
                full_spec(bout.shape),
            ],
            out_specs=pl.BlockSpec((T, block_b, P), lambda b: (0, b, 0)),
            scratch_shapes=[pltpu.VMEM((T, block_b, H), jnp.float32)],   # h1 sequence
        ),
        compiler_params=pltpu.CompilerParams(
            dimension_semantics=("parallel",)),
    )(gx, whh0, w1, b1, wout, bout)

    out = jnp.transpose(out_tbp, (1, 0, 2))                      # (B, T, P)
    if not is_batch:
        out = out[0]
    return out


def init_params(key, input_size, hidden_size, output_size):
    """Deterministic synthetic parameters (PyTorch-style, pre-transposed for x @ W).

    LSTM layer l: wih_l (in_features_l, 4H), whh_l (H, 4H), b_l = b_ih + b_hh (1, 4H).
    Output layer: wout (H, P), bout (1, P).
    """
    D_in = input_size + 1
    H = hidden_size
    k = 1.0 / jnp.sqrt(jnp.float32(H))
    keys = jax.random.split(key, 10)

    def u(kk, shape):
        return jax.random.uniform(kk, shape, jnp.float32, -k, k)

    wih0 = u(keys[0], (D_in, 4 * H))
    whh0 = u(keys[1], (H, 4 * H))
    b0 = u(keys[2], (1, 4 * H)) + u(keys[3], (1, 4 * H))
    wih1 = u(keys[4], (H, 4 * H))
    whh1 = u(keys[5], (H, 4 * H))
    b1 = u(keys[6], (1, 4 * H)) + u(keys[7], (1, 4 * H))
    wout = u(keys[8], (H, output_size))
    bout = u(keys[9], (1, output_size))
    return (wih0, whh0, b0, wih1, whh1, b1, wout, bout)


def reference_forward(x, params, hidden_size):
    """Pure-JAX reference (mirrors the PyTorch forward) for verification."""
    wih0, whh0, b0, wih1, whh1, b1, wout, bout = params
    is_batch = x.ndim == 3
    if not is_batch:
        x = x[None]
    B, T, _ = x.shape
    H = hidden_size

    def cell(x_t, h, c, wih, whh, b):
        g = x_t @ wih + h @ whh + b
        i = jax.nn.sigmoid(g[:, :H])
        f = jax.nn.sigmoid(g[:, H:2 * H])
        gg = jnp.tanh(g[:, 2 * H:3 * H])
        o = jax.nn.sigmoid(g[:, 3 * H:])
        c = f * c + i * gg
        h = o * jnp.tanh(c)
        return h, c

    def step(carry, x_t):
        h0, c0, h1, c1 = carry
        h0, c0 = cell(x_t, h0, c0, wih0, whh0, b0)
        h1, c1 = cell(h0, h1, c1, wih1, whh1, b1)
        out = h1 @ wout + bout
        return (h0, c0, h1, c1), out

    z = jnp.zeros((B, H), jnp.float32)
    _, outs = jax.lax.scan(step, (z, z, z, z), jnp.transpose(x, (1, 0, 2)))
    out_seq = jnp.transpose(outs, (1, 0, 2))            # (B, T, P)
    intensity = out_seq ** 2
    sums = jnp.sum(intensity, axis=(1, 2), keepdims=True)
    intensity = intensity * (T / (sums + 1e-8))
    if not is_batch:
        intensity = intensity[0]
    return intensity


if __name__ == "__main__":
    # Small shapes implied by the module: ports=4 -> input feature = ports+1 = 5
    input_size = 4        # ports
    hidden_size = 32
    output_size = 4       # ports
    B, T = 2, 8

    key = jax.random.PRNGKey(0)
    k_param, k_x = jax.random.split(key)
    params = init_params(k_param, input_size, hidden_size, output_size)
    x = jax.random.normal(k_x, (B, T, input_size + 1), jnp.float32)

    out = lstm_predictor_forward(x, params, hidden_size)
    out = jax.block_until_ready(out)

    ref = reference_forward(x, params, hidden_size)
    assert out.shape == (B, T, output_size)
    err = float(jnp.max(jnp.abs(out - ref)))
    assert jnp.allclose(out, ref, rtol=1e-3, atol=1e-3), f"max abs err {err}"

    # TODO(synk): dropout between LSTM layers is training-only; forward here is eval-mode identity.
    print("KERNEL_OK")
</pallas_src>

<mosaic_0001>
module attributes {stable_mosaic.version = 11 : i64} {
  func.func @_lstm_predictor_kernel(%arg0: i32, %arg1: memref<8x2x128xf32, #tpu.memory_space<vmem>>, %arg2: memref<32x128xf32, #tpu.memory_space<vmem>>, %arg3: memref<64x128xf32, #tpu.memory_space<vmem>>, %arg4: memref<1x128xf32, #tpu.memory_space<vmem>>, %arg5: memref<32x4xf32, #tpu.memory_space<vmem>>, %arg6: memref<1x4xf32, #tpu.memory_space<vmem>>, %arg7: memref<8x2x4xf32, #tpu.memory_space<vmem>>, %arg8: memref<8x2x32xf32, #tpu.memory_space<vmem>>) attributes {dimension_semantics = [#tpu.dimension_semantics<parallel>], iteration_bounds = array<i64: 1>, scalar_prefetch = 0 : i64, scratch_operands = 1 : i64, tpu.core_type = #tpu.core_type<tc>, window_params = [{transform_indices = @transform_0, window_bounds = array<i64: 8, 2, 128>}, {pipeline_mode = #tpu.pipeline_mode<synchronous>, transform_indices = @transform_1, window_bounds = array<i64: 32, 128>}, {pipeline_mode = #tpu.pipeline_mode<synchronous>, transform_indices = @transform_2, window_bounds = array<i64: 64, 128>}, {pipeline_mode = #tpu.pipeline_mode<synchronous>, transform_indices = @transform_3, window_bounds = array<i64: 1, 128>}, {pipeline_mode = #tpu.pipeline_mode<synchronous>, transform_indices = @transform_4, window_bounds = array<i64: 32, 4>}, {pipeline_mode = #tpu.pipeline_mode<synchronous>, transform_indices = @transform_5, window_bounds = array<i64: 1, 4>}, {transform_indices = @transform_6, window_bounds = array<i64: 8, 2, 4>}]} {
    %c0 = arith.constant 0 : index
    %c0_0 = arith.constant 0 : index
    %0 = vector.load %arg2[%c0, %c0_0] : memref<32x128xf32, #tpu.memory_space<vmem>>, vector<32x128xf32>
    %c0_1 = arith.constant 0 : index
    %c0_2 = arith.constant 0 : index
    %1 = vector.load %arg3[%c0_1, %c0_2] : memref<64x128xf32, #tpu.memory_space<vmem>>, vector<64x128xf32>
    %c0_3 = arith.constant 0 : index
    %c0_4 = arith.constant 0 : index
    %2 = vector.load %arg4[%c0_3, %c0_4] : memref<1x128xf32, #tpu.memory_space<vmem>>, vector<1x128xf32>
    %3 = vector.shape_cast %2 : vector<1x128xf32> to vector<1x128xf32>
    %4 = vector.broadcast %3 : vector<1x128xf32> to vector<2x128xf32>
    %cst = arith.constant 0.000000e+00 : f32
    %5 = vector.broadcast %cst : f32 to vector<2x32xf32>
    %c0_i32 = arith.constant 0 : i32
    %6 = arith.index_cast %c0_i32 : i32 to index
    %c0_5 = arith.constant 0 : index
    %c0_6 = arith.constant 0 : index
    %7 = vector.load %arg1[%6, %c0_5, %c0_6] : memref<8x2x128xf32, #tpu.memory_space<vmem>>, vector<1x2x128xf32>
    %8 = vector.shape_cast %7 : vector<1x2x128xf32> to vector<2x128xf32>
    %cst_7 = arith.constant dense<0.000000e+00> : vector<2x128xf32>
    %9 = tpu.matmul %5, %0, %cst_7 {dimension_numbers = #tpu.dot_dimension_numbers<[1], [0], [0], [1], [0, 0, 1, 1], [], []>} : vector<2x32xf32>, vector<32x128xf32>, vector<2x128xf32> -> vector<2x128xf32>
    %10 = arith.addf %8, %9 : vector<2x128xf32>
    %11 = vector.extract_strided_slice %10 {offsets = [0, 0], sizes = [2, 32], strides = [1, 1]} : vector<2x128xf32> to vector<2x32xf32>
    %12 = arith.negf %11 : vector<2x32xf32>
    %13 = math.exp %12 : vector<2x32xf32>
    %cst_8 = arith.constant 1.000000e+00 : f32
    %14 = vector.broadcast %cst_8 : f32 to vector<2x32xf32>
    %15 = arith.addf %14, %13 : vector<2x32xf32>
    %16 = arith.divf %14, %15 : vector<2x32xf32>
    %17 = vector.extract_strided_slice %10 {offsets = [0, 32], sizes = [2, 32], strides = [1, 1]} : vector<2x128xf32> to vector<2x32xf32>
    %18 = arith.negf %17 : vector<2x32xf32>
    %19 = math.exp %18 : vector<2x32xf32>
    %cst_9 = arith.constant 1.000000e+00 : f32
    %20 = vector.broadcast %cst_9 : f32 to vector<2x32xf32>
    %21 = arith.addf %20, %19 : vector<2x32xf32>
    %22 = arith.divf %20, %21 : vector<2x32xf32>
    %23 = vector.extract_strided_slice %10 {offsets = [0, 64], sizes = [2, 32], strides = [1, 1]} : vector<2x128xf32> to vector<2x32xf32>
    %24 = math.tanh %23 : vector<2x32xf32>
    %25 = vector.extract_strided_slice %10 {offsets = [0, 96], sizes = [2, 32], strides = [1, 1]} : vector<2x128xf32> to vector<2x32xf32>
    %26 = arith.negf %25 : vector<2x32xf32>
    %27 = math.exp %26 : vector<2x32xf32>
    %cst_10 = arith.constant 1.000000e+00 : f32
    %28 = vector.broadcast %cst_10 : f32 to vector<2x32xf32>
    %29 = arith.addf %28, %27 : vector<2x32xf32>
    %30 = arith.divf %28, %29 : vector<2x32xf32>
    %31 = arith.mulf %22, %5 : vector<2x32xf32>
    %32 = arith.mulf %16, %24 : vector<2x32xf32>
    %33 = arith.addf %31, %32 : vector<2x32xf32>
    %34 = math.tanh %33 : vector<2x32xf32>
    %35 = arith.mulf %30, %34 : vector<2x32xf32>
    %36 = tpu.concatenate %35, %5 in 1 : vector<2x32xf32>, vector<2x32xf32> -> vector<2x64xf32>
    %cst_11 = arith.constant dense<0.000000e+00> : vector<2x128xf32>
    %37 = tpu.matmul %36, %1, %cst_11 {dimension_numbers = #tpu.dot_dimension_numbers<[1], [0], [0], [1], [0, 0, 1, 1], [], []>} : vector<2x64xf32>, vector<64x128xf32>, vector<2x128xf32> -> vector<2x128xf32>
    %38 = arith.addf %37, %4 : vector<2x128xf32>
    %39 = vector.extract_strided_slice %38 {offsets = [0, 0], sizes = [2, 32], strides = [1, 1]} : vector<2x128xf32> to vector<2x32xf32>
    %40 = arith.negf %39 : vector<2x32xf32>
    %41 = math.exp %40 : vector<2x32xf32>
    %cst_12 = arith.constant 1.000000e+00 : f32
    %42 = vector.broadcast %cst_12 : f32 to vector<2x32xf32>
    %43 = arith.addf %42, %41 : vector<2x32xf32>
    %44 = arith.divf %42, %43 : vector<2x32xf32>
    %45 = vector.extract_strided_slice %38 {offsets = [0, 32], sizes = [2, 32], strides = [1, 1]} : vector<2x128xf32> to vector<2x32xf32>
    %46 = arith.negf %45 : vector<2x32xf32>
    %47 = math.exp %46 : vector<2x32xf32>
    %cst_13 = arith.constant 1.000000e+00 : f32
    %48 = vector.broadcast %cst_13 : f32 to vector<2x32xf32>
    %49 = arith.addf %48, %47 : vector<2x32xf32>
    %50 = arith.divf %48, %49 : vector<2x32xf32>
    %51 = vector.extract_strided_slice %38 {offsets = [0, 64], sizes = [2, 32], strides = [1, 1]} : vector<2x128xf32> to vector<2x32xf32>
    %52 = math.tanh %51 : vector<2x32xf32>
    %53 = vector.extract_strided_slice %38 {offsets = [0, 96], sizes = [2, 32], strides = [1, 1]} : vector<2x128xf32> to vector<2x32xf32>
    %54 = arith.negf %53 : vector<2x32xf32>
    %55 = math.exp %54 : vector<2x32xf32>
    %cst_14 = arith.constant 1.000000e+00 : f32
    %56 = vector.broadcast %cst_14 : f32 to vector<2x32xf32>
    %57 = arith.addf %56, %55 : vector<2x32xf32>
    %58 = arith.divf %56, %57 : vector<2x32xf32>
    %59 = arith.mulf %50, %5 : vector<2x32xf32>
    %60 = arith.mulf %44, %52 : vector<2x32xf32>
    %61 = arith.addf %59, %60 : vector<2x32xf32>
    %62 = math.tanh %61 : vector<2x32xf32>
    %63 = arith.mulf %58, %62 : vector<2x32xf32>
    %64 = arith.index_cast %c0_i32 : i32 to index
    %c0_15 = arith.constant 0 : index
    %c0_16 = arith.constant 0 : index
    %65 = vector.load %arg8[%64, %c0_15, %c0_16] : memref<8x2x32xf32, #tpu.memory_space<vmem>>, vector<1x2x32xf32>
    %66 = vector.shape_cast %65 : vector<1x2x32xf32> to vector<2x32xf32>
    %67 = vector.shape_cast %63 : vector<2x32xf32> to vector<1x2x32xf32>
    tpu.vector_store %arg8[%64, %c0_15, %c0_16], %67 {strides = array<i32>} : memref<8x2x32xf32, #tpu.memory_space<vmem>>, vector<1x2x32xf32>,
    %c1_i32 = arith.constant 1 : i32
    %68 = arith.index_cast %c1_i32 : i32 to index
    %c0_17 = arith.constant 0 : index
    %c0_18 = arith.constant 0 : index
    %69 = vector.load %arg1[%68, %c0_17, %c0_18] : memref<8x2x128xf32, #tpu.memory_space<vmem>>, vector<1x2x128xf32>
    %70 = vector.shape_cast %69 : vector<1x2x128xf32> to vector<2x128xf32>
    %cst_19 = arith.constant dense<0.000000e+00> : vector<2x128xf32>
    %71 = tpu.matmul %35, %0, %cst_19 {dimension_numbers = #tpu.dot_dimension_numbers<[1], [0], [0], [1], [0, 0, 1, 1], [], []>} : vector<2x32xf32>, vector<32x128xf32>, vector<2x128xf32> -> vector<2x128xf32>
    %72 = arith.addf %70, %71 : vector<2x128xf32>
    %73 = vector.extract_strided_slice %72 {offsets = [0, 0], sizes = [2, 32], strides = [1, 1]} : vector<2x128xf32> to vector<2x32xf32>
    %74 = arith.negf %73 : vector<2x32xf32>
    %75 = math.exp %74 : vector<2x32xf32>
    %cst_20 = arith.constant 1.000000e+00 : f32
    %76 = vector.broadcast %cst_20 : f32 to vector<2x32xf32>
    %77 = arith.addf %76, %75 : vector<2x32xf32>
    %78 = arith.divf %76, %77 : vector<2x32xf32>
    %79 = vector.extract_strided_slice %72 {offsets = [0, 32], sizes = [2, 32], strides = [1, 1]} : vector<2x128xf32> to vector<2x32xf32>
    %80 = arith.negf %79 : vector<2x32xf32>
    %81 = math.exp %80 : vector<2x32xf32>
    %cst_21 = arith.constant 1.000000e+00 : f32
    %82 = vector.broadcast %cst_21 : f32 to vector<2x32xf32>
    %83 = arith.addf %82, %81 : vector<2x32xf32>
    %84 = arith.divf %82, %83 : vector<2x32xf32>
    %85 = vector.extract_strided_slice %72 {offsets = [0, 64], sizes = [2, 32], strides = [1, 1]} : vector<2x128xf32> to vector<2x32xf32>
    %86 = math.tanh %85 : vector<2x32xf32>
    %87 = vector.extract_strided_slice %72 {offsets = [0, 96], sizes = [2, 32], strides = [1, 1]} : vector<2x128xf32> to vector<2x32xf32>
    %88 = arith.negf %87 : vector<2x32xf32>
    %89 = math.exp %88 : vector<2x32xf32>
    %cst_22 = arith.constant 1.000000e+00 : f32
    %90 = vector.broadcast %cst_22 : f32 to vector<2x32xf32>
    %91 = arith.addf %90, %89 : vector<2x32xf32>
    %92 = arith.divf %90, %91 : vector<2x32xf32>
    %93 = arith.mulf %84, %33 : vector<2x32xf32>
    %94 = arith.mulf %78, %86 : vector<2x32xf32>
    %95 = arith.addf %93, %94 : vector<2x32xf32>
    %96 = math.tanh %95 : vector<2x32xf32>
    %97 = arith.mulf %92, %96 : vector<2x32xf32>
    %98 = tpu.concatenate %97, %63 in 1 : vector<2x32xf32>, vector<2x32xf32> -> vector<2x64xf32>
    %cst_23 = arith.constant dense<0.000000e+00> : vector<2x128xf32>
    %99 = tpu.matmul %98, %1, %cst_23 {dimension_numbers = #tpu.dot_dimension_numbers<[1], [0], [0], [1], [0, 0, 1, 1], [], []>} : vector<2x64xf32>, vector<64x128xf32>, vector<2x128xf32> -> vector<2x128xf32>
    %100 = arith.addf %99, %4 : vector<2x128xf32>
    %101 = vector.extract_strided_slice %100 {offsets = [0, 0], sizes = [2, 32], strides = [1, 1]} : vector<2x128xf32> to vector<2x32xf32>
    %102 = arith.negf %101 : vector<2x32xf32>
    %103 = math.exp %102 : vector<2x32xf32>
    %cst_24 = arith.constant 1.000000e+00 : f32
    %104 = vector.broadcast %cst_24 : f32 to vector<2x32xf32>
    %105 = arith.addf %104, %103 : vector<2x32xf32>
    %106 = arith.divf %104, %105 : vector<2x32xf32>
    %107 = vector.extract_strided_slice %100 {offsets = [0, 32], sizes = [2, 32], strides = [1, 1]} : vector<2x128xf32> to vector<2x32xf32>
    %108 = arith.negf %107 : vector<2x32xf32>
    %109 = math.exp %108 : vector<2x32xf32>
    %cst_25 = arith.constant 1.000000e+00 : f32
    %110 = vector.broadcast %cst_25 : f32 to vector<2x32xf32>
    %111 = arith.addf %110, %109 : vector<2x32xf32>
    %112 = arith.divf %110, %111 : vector<2x32xf32>
    %113 = vector.extract_strided_slice %100 {offsets = [0, 64], sizes = [2, 32], strides = [1, 1]} : vector<2x128xf32> to vector<2x32xf32>
    %114 = math.tanh %113 : vector<2x32xf32>
    %115 = vector.extract_strided_slice %100 {offsets = [0, 96], sizes = [2, 32], strides = [1, 1]} : vector<2x128xf32> to vector<2x32xf32>
    %116 = arith.negf %115 : vector<2x32xf32>
    %117 = math.exp %116 : vector<2x32xf32>
    %cst_26 = arith.constant 1.000000e+00 : f32
    %118 = vector.broadcast %cst_26 : f32 to vector<2x32xf32>
    %119 = arith.addf %118, %117 : vector<2x32xf32>
    %120 = arith.divf %118, %119 : vector<2x32xf32>
    %121 = arith.mulf %112, %61 : vector<2x32xf32>
    %122 = arith.mulf %106, %114 : vector<2x32xf32>
    %123 = arith.addf %121, %122 : vector<2x32xf32>
    %124 = math.tanh %123 : vector<2x32xf32>
    %125 = arith.mulf %120, %124 : vector<2x32xf32>
    %126 = arith.index_cast %c1_i32 : i32 to index
    %c0_27 = arith.constant 0 : index
    %c0_28 = arith.constant 0 : index
    %127 = vector.load %arg8[%126, %c0_27, %c0_28] : memref<8x2x32xf32, #tpu.memory_space<vmem>>, vector<1x2x32xf32>
    %128 = vector.shape_cast %127 : vector<1x2x32xf32> to vector<2x32xf32>
    %129 = vector.shape_cast %125 : vector<2x32xf32> to vector<1x2x32xf32>
    tpu.vector_store %arg8[%126, %c0_27, %c0_28], %129 {strides = array<i32>} : memref<8x2x32xf32, #tpu.memory_space<vmem>>, vector<1x2x32xf32>,
    %c2_i32 = arith.constant 2 : i32
    %130 = arith.index_cast %c2_i32 : i32 to index
    %c0_29 = arith.constant 0 : index
    %c0_30 = arith.constant 0 : index
    %131 = vector.load %arg1[%130, %c0_29, %c0_30] : memref<8x2x128xf32, #tpu.memory_space<vmem>>, vector<1x2x128xf32>
    %132 = vector.shape_cast %131 : vector<1x2x128xf32> to vector<2x128xf32>
    %cst_31 = arith.constant dense<0.000000e+00> : vector<2x128xf32>
    %133 = tpu.matmul %97, %0, %cst_31 {dimension_numbers = #tpu.dot_dimension_numbers<[1], [0], [0], [1], [0, 0, 1, 1], [], []>} : vector<2x32xf32>, vector<32x128xf32>, vector<2x128xf32> -> vector<2x128xf32>
    %134 = arith.addf %132, %133 : vector<2x128xf32>
    %135 = vector.extract_strided_slice %134 {offsets = [0, 0], sizes = [2, 32], strides = [1, 1]} : vector<2x128xf32> to vector<2x32xf32>
    %136 = arith.negf %135 : vector<2x32xf32>
    %137 = math.exp %136 : vector<2x32xf32>
    %cst_32 = arith.constant 1.000000e+00 : f32
    %138 = vector.broadcast %cst_32 : f32 to vector<2x32xf32>
    %139 = arith.addf %138, %137 : vector<2x32xf32>
    %140 = arith.divf %138, %139 : vector<2x32xf32>
    %141 = vector.extract_strided_slice %134 {offsets = [0, 32], sizes = [2, 32], strides = [1, 1]} : vector<2x128xf32> to vector<2x32xf32>
    %142 = arith.negf %141 : vector<2x32xf32>
    %143 = math.exp %142 : vector<2x32xf32>
    %cst_33 = arith.constant 1.000000e+00 : f32
    %144 = vector.broadcast %cst_33 : f32 to vector<2x32xf32>
    %145 = arith.addf %144, %143 : vector<2x32xf32>
    %146 = arith.divf %144, %145 : vector<2x32xf32>
    %147 = vector.extract_strided_slice %134 {offsets = [0, 64], sizes = [2, 32], strides = [1, 1]} : vector<2x128xf32> to vector<2x32xf32>
    %148 = math.tanh %147 : vector<2x32xf32>
    %149 = vector.extract_strided_slice %134 {offsets = [0, 96], sizes = [2, 32], strides = [1, 1]} : vector<2x128xf32> to vector<2x32xf32>
    %150 = arith.negf %149 : vector<2x32xf32>
    %151 = math.exp %150 : vector<2x32xf32>
    %cst_34 = arith.constant 1.000000e+00 : f32
    %152 = vector.broadcast %cst_34 : f32 to vector<2x32xf32>
    %153 = arith.addf %152, %151 : vector<2x32xf32>
    %154 = arith.divf %152, %153 : vector<2x32xf32>
    %155 = arith.mulf %146, %95 : vector<2x32xf32>
    %156 = arith.mulf %140, %148 : vector<2x32xf32>
    %157 = arith.addf %155, %156 : vector<2x32xf32>
    %158 = math.tanh %157 : vector<2x32xf32>
    %159 = arith.mulf %154, %158 : vector<2x32xf32>
    %160 = tpu.concatenate %159, %125 in 1 : vector<2x32xf32>, vector<2x32xf32> -> vector<2x64xf32>
    %cst_35 = arith.constant dense<0.000000e+00> : vector<2x128xf32>
    %161 = tpu.matmul %160, %1, %cst_35 {dimension_numbers = #tpu.dot_dimension_numbers<[1], [0], [0], [1], [0, 0, 1, 1], [], []>} : vector<2x64xf32>, vector<64x128xf32>, vector<2x128xf32> -> vector<2x128xf32>
    %162 = arith.addf %161, %4 : vector<2x128xf32>
    %163 = vector.extract_strided_slice %162 {offsets = [0, 0], sizes = [2, 32], strides = [1, 1]} : vector<2x128xf32> to vector<2x32xf32>
    %164 = arith.negf %163 : vector<2x32xf32>
    %165 = math.exp %164 : vector<2x32xf32>
    %cst_36 = arith.constant 1.000000e+00 : f32
    %166 = vector.broadcast %cst_36 : f32 to vector<2x32xf32>
    %167 = arith.addf %166, %165 : vector<2x32xf32>
    %168 = arith.divf %166, %167 : vector<2x32xf32>
    %169 = vector.extract_strided_slice %162 {offsets = [0, 32], sizes = [2, 32], strides = [1, 1]} : vector<2x128xf32> to vector<2x32xf32>
    %170 = arith.negf %169 : vector<2x32xf32>
    %171 = math.exp %170 : vector<2x32xf32>
    %cst_37 = arith.constant 1.000000e+00 : f32
    %172 = vector.broadcast %cst_37 : f32 to vector<2x32xf32>
    %173 = arith.addf %172, %171 : vector<2x32xf32>
    %174 = arith.divf %172, %173 : vector<2x32xf32>
    %175 = vector.extract_strided_slice %162 {offsets = [0, 64], sizes = [2, 32], strides = [1, 1]} : vector<2x128xf32> to vector<2x32xf32>
    %176 = math.tanh %175 : vector<2x32xf32>
    %177 = vector.extract_strided_slice %162 {offsets = [0, 96], sizes = [2, 32], strides = [1, 1]} : vector<2x128xf32> to vector<2x32xf32>
    %178 = arith.negf %177 : vector<2x32xf32>
    %179 = math.exp %178 : vector<2x32xf32>
    %cst_38 = arith.constant 1.000000e+00 : f32
    %180 = vector.broadcast %cst_38 : f32 to vector<2x32xf32>
    %181 = arith.addf %180, %179 : vector<2x32xf32>
    %182 = arith.divf %180, %181 : vector<2x32xf32>
    %183 = arith.mulf %174, %123 : vector<2x32xf32>
    %184 = arith.mulf %168, %176 : vector<2x32xf32>
    %185 = arith.addf %183, %184 : vector<2x32xf32>
    %186 = math.tanh %185 : vector<2x32xf32>
    %187 = arith.mulf %182, %186 : vector<2x32xf32>
    %188 = arith.index_cast %c2_i32 : i32 to index
    %c0_39 = arith.constant 0 : index
    %c0_40 = arith.constant 0 : index
    %189 = vector.load %arg8[%188, %c0_39, %c0_40] : memref<8x2x32xf32, #tpu.memory_space<vmem>>, vector<1x2x32xf32>
    %190 = vector.shape_cast %189 : vector<1x2x32xf32> to vector<2x32xf32>
    %191 = vector.shape_cast %187 : vector<2x32xf32> to vector<1x2x32xf32>
    tpu.vector_store %arg8[%188, %c0_39, %c0_40], %191 {strides = array<i32>} : memref<8x2x32xf32, #tpu.memory_space<vmem>>, vector<1x2x32xf32>,
    %c3_i32 = arith.constant 3 : i32
    %192 = arith.index_cast %c3_i32 : i32 to index
    %c0_41 = arith.constant 0 : index
    %c0_42 = arith.constant 0 : index
    %193 = vector.load %arg1[%192, %c0_41, %c0_42] : memref<8x2x128xf32, #tpu.memory_space<vmem>>, vector<1x2x128xf32>
    %194 = vector.shape_cast %193 : vector<1x2x128xf32> to vector<2x128xf32>
    %cst_43 = arith.constant dense<0.000000e+00> : vector<2x128xf32>
    %195 = tpu.matmul %159, %0, %cst_43 {dimension_numbers = #tpu.dot_dimension_numbers<[1], [0], [0], [1], [0, 0, 1, 1], [], []>} : vector<2x32xf32>, vector<32x128xf32>, vector<2x128xf32> -> vector<2x128xf32>
    %196 = arith.addf %194, %195 : vector<2x128xf32>
    %197 = vector.extract_strided_slice %196 {offsets = [0, 0], sizes = [2, 32], strides = [1, 1]} : vector<2x128xf32> to vector<2x32xf32>
    %198 = arith.negf %197 : vector<2x32xf32>
    %199 = math.exp %198 : vector<2x32xf32>
    %cst_44 = arith.constant 1.000000e+00 : f32
    %200 = vector.broadcast %cst_44 : f32 to vector<2x32xf32>
    %201 = arith.addf %200, %199 : vector<2x32xf32>
    %202 = arith.divf %200, %201 : vector<2x32xf32>
    %203 = vector.extract_strided_slice %196 {offsets = [0, 32], sizes = [2, 32], strides = [1, 1]} : vector<2x128xf32> to vector<2x32xf32>
    %204 = arith.negf %203 : vector<2x32xf32>
    %205 = math.exp %204 : vector<2x32xf32>
    %cst_45 = arith.constant 1.000000e+00 : f32
    %206 = vector.broadcast %cst_45 : f32 to vector<2x32xf32>
    %207 = arith.addf %206, %205 : vector<2x32xf32>
    %208 = arith.divf %206, %207 : vector<2x32xf32>
    %209 = vector.extract_strided_slice %196 {offsets = [0, 64], sizes = [2, 32], strides = [1, 1]} : vector<2x128xf32> to vector<2x32xf32>
    %210 = math.tanh %209 : vector<2x32xf32>
    %211 = vector.extract_strided_slice %196 {offsets = [0, 96], sizes = [2, 32], strides = [1, 1]} : vector<2x128xf32> to vector<2x32xf32>
    %212 = arith.negf %211 : vector<2x32xf32>
    %213 = math.exp %212 : vector<2x32xf32>
    %cst_46 = arith.constant 1.000000e+00 : f32
    %214 = vector.broadcast %cst_46 : f32 to vector<2x32xf32>
    %215 = arith.addf %214, %213 : vector<2x32xf32>
    %216 = arith.divf %214, %215 : vector<2x32xf32>
    %217 = arith.mulf %208, %157 : vector<2x32xf32>
    %218 = arith.mulf %202, %210 : vector<2x32xf32>
    %219 = arith.addf %217, %218 : vector<2x32xf32>
    %220 = math.tanh %219 : vector<2x32xf32>
    %221 = arith.mulf %216, %220 : vector<2x32xf32>
    %222 = tpu.concatenate %221, %187 in 1 : vector<2x32xf32>, vector<2x32xf32> -> vector<2x64xf32>
    %cst_47 = arith.constant dense<0.000000e+00> : vector<2x128xf32>
    %223 = tpu.matmul %222, %1, %cst_47 {dimension_numbers = #tpu.dot_dimension_numbers<[1], [0], [0], [1], [0, 0, 1, 1], [], []>} : vector<2x64xf32>, vector<64x128xf32>, vector<2x128xf32> -> vector<2x128xf32>
    %224 = arith.addf %223, %4 : vector<2x128xf32>
    %225 = vector.extract_strided_slice %224 {offsets = [0, 0], sizes = [2, 32], strides = [1, 1]} : vector<2x128xf32> to vector<2x32xf32>
    %226 = arith.negf %225 : vector<2x32xf32>
    %227 = math.exp %226 : vector<2x32xf32>
    %cst_48 = arith.constant 1.000000e+00 : f32
    %228 = vector.broadcast %cst_48 : f32 to vector<2x32xf32>
    %229 = arith.addf %228, %227 : vector<2x32xf32>
    %230 = arith.divf %228, %229 : vector<2x32xf32>
    %231 = vector.extract_strided_slice %224 {offsets = [0, 32], sizes = [2, 32], strides = [1, 1]} : vector<2x128xf32> to vector<2x32xf32>
    %232 = arith.negf %231 : vector<2x32xf32>
    %233 = math.exp %232 : vector<2x32xf32>
    %cst_49 = arith.constant 1.000000e+00 : f32
    %234 = vector.broadcast %cst_49 : f32 to vector<2x32xf32>
    %235 = arith.addf %234, %233 : vector<2x32xf32>
    %236 = arith.divf %234, %235 : vector<2x32xf32>
    %237 = vector.extract_strided_slice %224 {offsets = [0, 64], sizes = [2, 32], strides = [1, 1]} : vector<2x128xf32> to vector<2x32xf32>
    %238 = math.tanh %237 : vector<2x32xf32>
    %239 = vector.extract_strided_slice %224 {offsets = [0, 96], sizes = [2, 32], strides = [1, 1]} : vector<2x128xf32> to vector<2x32xf32>
    %240 = arith.negf %239 : vector<2x32xf32>
    %241 = math.exp %240 : vector<2x32xf32>
    %cst_50 = arith.constant 1.000000e+00 : f32
    %242 = vector.broadcast %cst_50 : f32 to vector<2x32xf32>
    %243 = arith.addf %242, %241 : vector<2x32xf32>
    %244 = arith.divf %242, %243 : vector<2x32xf32>
    %245 = arith.mulf %236, %185 : vector<2x32xf32>
    %246 = arith.mulf %230, %238 : vector<2x32xf32>
    %247 = arith.addf %245, %246 : vector<2x32xf32>
    %248 = math.tanh %247 : vector<2x32xf32>
    %249 = arith.mulf %244, %248 : vector<2x32xf32>
    %250 = arith.index_cast %c3_i32 : i32 to index
    %c0_51 = arith.constant 0 : index
    %c0_52 = arith.constant 0 : index
    %251 = vector.load %arg8[%250, %c0_51, %c0_52] : memref<8x2x32xf32, #tpu.memory_space<vmem>>, vector<1x2x32xf32>
    %252 = vector.shape_cast %251 : vector<1x2x32xf32> to vector<2x32xf32>
    %253 = vector.shape_cast %249 : vector<2x32xf32> to vector<1x2x32xf32>
    tpu.vector_store %arg8[%250, %c0_51, %c0_52], %253 {strides = array<i32>} : memref<8x2x32xf32, #tpu.memory_space<vmem>>, vector<1x2x32xf32>,
    %c4_i32 = arith.constant 4 : i32
    %254 = arith.index_cast %c4_i32 : i32 to index
    %c0_53 = arith.constant 0 : index
    %c0_54 = arith.constant 0 : index
    %255 = vector.load %arg1[%254, %c0_53, %c0_54] : memref<8x2x128xf32, #tpu.memory_space<vmem>>, vector<1x2x128xf32>
    %256 = vector.shape_cast %255 : vector<1x2x128xf32> to vector<2x128xf32>
    %cst_55 = arith.constant dense<0.000000e+00> : vector<2x128xf32>
    %257 = tpu.matmul %221, %0, %cst_55 {dimension_numbers = #tpu.dot_dimension_numbers<[1], [0], [0], [1], [0, 0, 1, 1], [], []>} : vector<2x32xf32>, vector<32x128xf32>, vector<2x128xf32> -> vector<2x128xf32>
    %258 = arith.addf %256, %257 : vector<2x128xf32>
    %259 = vector.extract_strided_slice %258 {offsets = [0, 0], sizes = [2, 32], strides = [1, 1]} : vector<2x128xf32> to vector<2x32xf32>
    %260 = arith.negf %259 : vector<2x32xf32>
    %261 = math.exp %260 : vector<2x32xf32>
    %cst_56 = arith.constant 1.000000e+00 : f32
    %262 = vector.broadcast %cst_56 : f32 to vector<2x32xf32>
    %263 = arith.addf %262, %261 : vector<2x32xf32>
    %264 = arith.divf %262, %263 : vector<2x32xf32>
    %265 = vector.extract_strided_slice %258 {offsets = [0, 32], sizes = [2, 32], strides = [1, 1]} : vector<2x128xf32> to vector<2x32xf32>
    %266 = arith.negf %265 : vector<2x32xf32>
    %267 = math.exp %266 : vector<2x32xf32>
    %cst_57 = arith.constant 1.000000e+00 : f32
    %268 = vector.broadcast %cst_57 : f32 to vector<2x32xf32>
    %269 = arith.addf %268, %267 : vector<2x32xf32>
    %270 = arith.divf %268, %269 : vector<2x32xf32>
    %271 = vector.extract_strided_slice %258 {offsets = [0, 64], sizes = [2, 32], strides = [1, 1]} : vector<2x128xf32> to vector<2x32xf32>
    %272 = math.tanh %271 : vector<2x32xf32>
    %273 = vector.extract_strided_slice %258 {offsets = [0, 96], sizes = [2, 32], strides = [1, 1]} : vector<2x128xf32> to vector<2x32xf32>
    %274 = arith.negf %273 : vector<2x32xf32>
    %275 = math.exp %274 : vector<2x32xf32>
    %cst_58 = arith.constant 1.000000e+00 : f32
    %276 = vector.broadcast %cst_58 : f32 to vector<2x32xf32>
    %277 = arith.addf %276, %275 : vector<2x32xf32>
    %278 = arith.divf %276, %277 : vector<2x32xf32>
    %279 = arith.mulf %270, %219 : vector<2x32xf32>
    %280 = arith.mulf %264, %272 : vector<2x32xf32>
    %281 = arith.addf %279, %280 : vector<2x32xf32>
    %282 = math.tanh %281 : vector<2x32xf32>
    %283 = arith.mulf %278, %282 : vector<2x32xf32>
    %284 = tpu.concatenate %283, %249 in 1 : vector<2x32xf32>, vector<2x32xf32> -> vector<2x64xf32>
    %cst_59 = arith.constant dense<0.000000e+00> : vector<2x128xf32>
    %285 = tpu.matmul %284, %1, %cst_59 {dimension_numbers = #tpu.dot_dimension_numbers<[1], [0], [0], [1], [0, 0, 1, 1], [], []>} : vector<2x64xf32>, vector<64x128xf32>, vector<2x128xf32> -> vector<2x128xf32>
    %286 = arith.addf %285, %4 : vector<2x128xf32>
    %287 = vector.extract_strided_slice %286 {offsets = [0, 0], sizes = [2, 32], strides = [1, 1]} : vector<2x128xf32> to vector<2x32xf32>
    %288 = arith.negf %287 : vector<2x32xf32>
    %289 = math.exp %288 : vector<2x32xf32>
    %cst_60 = arith.constant 1.000000e+00 : f32
    %290 = vector.broadcast %cst_60 : f32 to vector<2x32xf32>
    %291 = arith.addf %290, %289 : vector<2x32xf32>
    %292 = arith.divf %290, %291 : vector<2x32xf32>
    %293 = vector.extract_strided_slice %286 {offsets = [0, 32], sizes = [2, 32], strides = [1, 1]} : vector<2x128xf32> to vector<2x32xf32>
    %294 = arith.negf %293 : vector<2x32xf32>
    %295 = math.exp %294 : vector<2x32xf32>
    %cst_61 = arith.constant 1.000000e+00 : f32
    %296 = vector.broadcast %cst_61 : f32 to vector<2x32xf32>
    %297 = arith.addf %296, %295 : vector<2x32xf32>
    %298 = arith.divf %296, %297 : vector<2x32xf32>
    %299 = vector.extract_strided_slice %286 {offsets = [0, 64], sizes = [2, 32], strides = [1, 1]} : vector<2x128xf32> to vector<2x32xf32>
    %300 = math.tanh %299 : vector<2x32xf32>
    %301 = vector.extract_strided_slice %286 {offsets = [0, 96], sizes = [2, 32], strides = [1, 1]} : vector<2x128xf32> to vector<2x32xf32>
    %302 = arith.negf %301 : vector<2x32xf32>
    %303 = math.exp %302 : vector<2x32xf32>
    %cst_62 = arith.constant 1.000000e+00 : f32
    %304 = vector.broadcast %cst_62 : f32 to vector<2x32xf32>
    %305 = arith.addf %304, %303 : vector<2x32xf32>
    %306 = arith.divf %304, %305 : vector<2x32xf32>
    %307 = arith.mulf %298, %247 : vector<2x32xf32>
    %308 = arith.mulf %292, %300 : vector<2x32xf32>
    %309 = arith.addf %307, %308 : vector<2x32xf32>
    %310 = math.tanh %309 : vector<2x32xf32>
    %311 = arith.mulf %306, %310 : vector<2x32xf32>
    %312 = arith.index_cast %c4_i32 : i32 to index
    %c0_63 = arith.constant 0 : index
    %c0_64 = arith.constant 0 : index
    %313 = vector.load %arg8[%312, %c0_63, %c0_64] : memref<8x2x32xf32, #tpu.memory_space<vmem>>, vector<1x2x32xf32>
    %314 = vector.shape_cast %313 : vector<1x2x32xf32> to vector<2x32xf32>
    %315 = vector.shape_cast %311 : vector<2x32xf32> to vector<1x2x32xf32>
    tpu.vector_store %arg8[%312, %c0_63, %c0_64], %315 {strides = array<i32>} : memref<8x2x32xf32, #tpu.memory_space<vmem>>, vector<1x2x32xf32>,
    %c5_i32 = arith.constant 5 : i32
    %316 = arith.index_cast %c5_i32 : i32 to index
    %c0_65 = arith.constant 0 : index
    %c0_66 = arith.constant 0 : index
    %317 = vector.load %arg1[%316, %c0_65, %c0_66] : memref<8x2x128xf32, #tpu.memory_space<vmem>>, vector<1x2x128xf32>
    %318 = vector.shape_cast %317 : vector<1x2x128xf32> to vector<2x128xf32>
    %cst_67 = arith.constant dense<0.000000e+00> : vector<2x128xf32>
    %319 = tpu.matmul %283, %0, %cst_67 {dimension_numbers = #tpu.dot_dimension_numbers<[1], [0], [0], [1], [0, 0, 1, 1], [], []>} : vector<2x32xf32>, vector<32x128xf32>, vector<2x128xf32> -> vector<2x128xf32>
    %320 = arith.addf %318, %319 : vector<2x128xf32>
    %321 = vector.extract_strided_slice %320 {offsets = [0, 0], sizes = [2, 32], strides = [1, 1]} : vector<2x128xf32> to vector<2x32xf32>
    %322 = arith.negf %321 : vector<2x32xf32>
    %323 = math.exp %322 : vector<2x32xf32>
    %cst_68 = arith.constant 1.000000e+00 : f32
    %324 = vector.broadcast %cst_68 : f32 to vector<2x32xf32>
    %325 = arith.addf %324, %323 : vector<2x32xf32>
    %326 = arith.divf %324, %325 : vector<2x32xf32>
    %327 = vector.extract_strided_slice %320 {offsets = [0, 32], sizes = [2, 32], strides = [1, 1]} : vector<2x128xf32> to vector<2x32xf32>
    %328 = arith.negf %327 : vector<2x32xf32>
    %329 = math.exp %328 : vector<2x32xf32>
    %cst_69 = arith.constant 1.000000e+00 : f32
    %330 = vector.broadcast %cst_69 : f32 to vector<2x32xf32>
    %331 = arith.addf %330, %329 : vector<2x32xf32>
    %332 = arith.divf %330, %331 : vector<2x32xf32>
    %333 = vector.extract_strided_slice %320 {offsets = [0, 64], sizes = [2, 32], strides = [1, 1]} : vector<2x128xf32> to vector<2x32xf32>
    %334 = math.tanh %333 : vector<2x32xf32>
    %335 = vector.extract_strided_slice %320 {offsets = [0, 96], sizes = [2, 32], strides = [1, 1]} : vector<2x128xf32> to vector<2x32xf32>
    %336 = arith.negf %335 : vector<2x32xf32>
    %337 = math.exp %336 : vector<2x32xf32>
    %cst_70 = arith.constant 1.000000e+00 : f32
    %338 = vector.broadcast %cst_70 : f32 to vector<2x32xf32>
    %339 = arith.addf %338, %337 : vector<2x32xf32>
    %340 = arith.divf %338, %339 : vector<2x32xf32>
    %341 = arith.mulf %332, %281 : vector<2x32xf32>
    %342 = arith.mulf %326, %334 : vector<2x32xf32>
    %343 = arith.addf %341, %342 : vector<2x32xf32>
    %344 = math.tanh %343 : vector<2x32xf32>
    %345 = arith.mulf %340, %344 : vector<2x32xf32>
    %346 = tpu.concatenate %345, %311 in 1 : vector<2x32xf32>, vector<2x32xf32> -> vector<2x64xf32>
    %cst_71 = arith.constant dense<0.000000e+00> : vector<2x128xf32>
    %347 = tpu.matmul %346, %1, %cst_71 {dimension_numbers = #tpu.dot_dimension_numbers<[1], [0], [0], [1], [0, 0, 1, 1], [], []>} : vector<2x64xf32>, vector<64x128xf32>, vector<2x128xf32> -> vector<2x128xf32>
    %348 = arith.addf %347, %4 : vector<2x128xf32>
    %349 = vector.extract_strided_slice %348 {offsets = [0, 0], sizes = [2, 32], strides = [1, 1]} : vector<2x128xf32> to vector<2x32xf32>
    %350 = arith.negf %349 : vector<2x32xf32>
    %351 = math.exp %350 : vector<2x32xf32>
    %cst_72 = arith.constant 1.000000e+00 : f32
    %352 = vector.broadcast %cst_72 : f32 to vector<2x32xf32>
    %353 = arith.addf %352, %351 : vector<2x32xf32>
    %354 = arith.divf %352, %353 : vector<2x32xf32>
    %355 = vector.extract_strided_slice %348 {offsets = [0, 32], sizes = [2, 32], strides = [1, 1]} : vector<2x128xf32> to vector<2x32xf32>
    %356 = arith.negf %355 : vector<2x32xf32>
    %357 = math.exp %356 : vector<2x32xf32>
    %cst_73 = arith.constant 1.000000e+00 : f32
    %358 = vector.broadcast %cst_73 : f32 to vector<2x32xf32>
    %359 = arith.addf %358, %357 : vector<2x32xf32>
    %360 = arith.divf %358, %359 : vector<2x32xf32>
    %361 = vector.extract_strided_slice %348 {offsets = [0, 64], sizes = [2, 32], strides = [1, 1]} : vector<2x128xf32> to vector<2x32xf32>
    %362 = math.tanh %361 : vector<2x32xf32>
    %363 = vector.extract_strided_slice %348 {offsets = [0, 96], sizes = [2, 32], strides = [1, 1]} : vector<2x128xf32> to vector<2x32xf32>
    %364 = arith.negf %363 : vector<2x32xf32>
    %365 = math.exp %364 : vector<2x32xf32>
    %cst_74 = arith.constant 1.000000e+00 : f32
    %366 = vector.broadcast %cst_74 : f32 to vector<2x32xf32>
    %367 = arith.addf %366, %365 : vector<2x32xf32>
    %368 = arith.divf %366, %367 : vector<2x32xf32>
    %369 = arith.mulf %360, %309 : vector<2x32xf32>
    %370 = arith.mulf %354, %362 : vector<2x32xf32>
    %371 = arith.addf %369, %370 : vector<2x32xf32>
    %372 = math.tanh %371 : vector<2x32xf32>
    %373 = arith.mulf %368, %372 : vector<2x32xf32>
    %374 = arith.index_cast %c5_i32 : i32 to index
    %c0_75 = arith.constant 0 : index
    %c0_76 = arith.constant 0 : index
    %375 = vector.load %arg8[%374, %c0_75, %c0_76] : memref<8x2x32xf32, #tpu.memory_space<vmem>>, vector<1x2x32xf32>
    %376 = vector.shape_cast %375 : vector<1x2x32xf32> to vector<2x32xf32>
    %377 = vector.shape_cast %373 : vector<2x32xf32> to vector<1x2x32xf32>
    tpu.vector_store %arg8[%374, %c0_75, %c0_76], %377 {strides = array<i32>} : memref<8x2x32xf32, #tpu.memory_space<vmem>>, vector<1x2x32xf32>,
    %c6_i32 = arith.constant 6 : i32
    %378 = arith.index_cast %c6_i32 : i32 to index
    %c0_77 = arith.constant 0 : index
    %c0_78 = arith.constant 0 : index
    %379 = vector.load %arg1[%378, %c0_77, %c0_78] : memref<8x2x128xf32, #tpu.memory_space<vmem>>, vector<1x2x128xf32>
    %380 = vector.shape_cast %379 : vector<1x2x128xf32> to vector<2x128xf32>
    %cst_79 = arith.constant dense<0.000000e+00> : vector<2x128xf32>
    %381 = tpu.matmul %345, %0, %cst_79 {dimension_numbers = #tpu.dot_dimension_numbers<[1], [0], [0], [1], [0, 0, 1, 1], [], []>} : vector<2x32xf32>, vector<32x128xf32>, vector<2x128xf32> -> vector<2x128xf32>
    %382 = arith.addf %380, %381 : vector<2x128xf32>
    %383 = vector.extract_strided_slice %382 {offsets = [0, 0], sizes = [2, 32], strides = [1, 1]} : vector<2x128xf32> to vector<2x32xf32>
    %384 = arith.negf %383 : vector<2x32xf32>
    %385 = math.exp %384 : vector<2x32xf32>
    %cst_80 = arith.constant 1.000000e+00 : f32
    %386 = vector.broadcast %cst_80 : f32 to vector<2x32xf32>
    %387 = arith.addf %386, %385 : vector<2x32xf32>
    %388 = arith.divf %386, %387 : vector<2x32xf32>
    %389 = vector.extract_strided_slice %382 {offsets = [0, 32], sizes = [2, 32], strides = [1, 1]} : vector<2x128xf32> to vector<2x32xf32>
    %390 = arith.negf %389 : vector<2x32xf32>
    %391 = math.exp %390 : vector<2x32xf32>
    %cst_81 = arith.constant 1.000000e+00 : f32
    %392 = vector.broadcast %cst_81 : f32 to vector<2x32xf32>
    %393 = arith.addf %392, %391 : vector<2x32xf32>
    %394 = arith.divf %392, %393 : vector<2x32xf32>
    %395 = vector.extract_strided_slice %382 {offsets = [0, 64], sizes = [2, 32], strides = [1, 1]} : vector<2x128xf32> to vector<2x32xf32>
    %396 = math.tanh %395 : vector<2x32xf32>
    %397 = vector.extract_strided_slice %382 {offsets = [0, 96], sizes = [2, 32], strides = [1, 1]} : vector<2x128xf32> to vector<2x32xf32>
    %398 = arith.negf %397 : vector<2x32xf32>
    %399 = math.exp %398 : vector<2x32xf32>
    %cst_82 = arith.constant 1.000000e+00 : f32
    %400 = vector.broadcast %cst_82 : f32 to vector<2x32xf32>
    %401 = arith.addf %400, %399 : vector<2x32xf32>
    %402 = arith.divf %400, %401 : vector<2x32xf32>
    %403 = arith.mulf %394, %343 : vector<2x32xf32>
    %404 = arith.mulf %388, %396 : vector<2x32xf32>
    %405 = arith.addf %403, %404 : vector<2x32xf32>
    %406 = math.tanh %405 : vector<2x32xf32>
    %407 = arith.mulf %402, %406 : vector<2x32xf32>
    %408 = tpu.concatenate %407, %373 in 1 : vector<2x32xf32>, vector<2x32xf32> -> vector<2x64xf32>
    %cst_83 = arith.constant dense<0.000000e+00> : vector<2x128xf32>
    %409 = tpu.matmul %408, %1, %cst_83 {dimension_numbers = #tpu.dot_dimension_numbers<[1], [0], [0], [1], [0, 0, 1, 1], [], []>} : vector<2x64xf32>, vector<64x128xf32>, vector<2x128xf32> -> vector<2x128xf32>
    %410 = arith.addf %409, %4 : vector<2x128xf32>
    %411 = vector.extract_strided_slice %410 {offsets = [0, 0], sizes = [2, 32], strides = [1, 1]} : vector<2x128xf32> to vector<2x32xf32>
    %412 = arith.negf %411 : vector<2x32xf32>
    %413 = math.exp %412 : vector<2x32xf32>
    %cst_84 = arith.constant 1.000000e+00 : f32
    %414 = vector.broadcast %cst_84 : f32 to vector<2x32xf32>
    %415 = arith.addf %414, %413 : vector<2x32xf32>
    %416 = arith.divf %414, %415 : vector<2x32xf32>
    %417 = vector.extract_strided_slice %410 {offsets = [0, 32], sizes = [2, 32], strides = [1, 1]} : vector<2x128xf32> to vector<2x32xf32>
    %418 = arith.negf %417 : vector<2x32xf32>
    %419 = math.exp %418 : vector<2x32xf32>
    %cst_85 = arith.constant 1.000000e+00 : f32
    %420 = vector.broadcast %cst_85 : f32 to vector<2x32xf32>
    %421 = arith.addf %420, %419 : vector<2x32xf32>
    %422 = arith.divf %420, %421 : vector<2x32xf32>
    %423 = vector.extract_strided_slice %410 {offsets = [0, 64], sizes = [2, 32], strides = [1, 1]} : vector<2x128xf32> to vector<2x32xf32>
    %424 = math.tanh %423 : vector<2x32xf32>
    %425 = vector.extract_strided_slice %410 {offsets = [0, 96], sizes = [2, 32], strides = [1, 1]} : vector<2x128xf32> to vector<2x32xf32>
    %426 = arith.negf %425 : vector<2x32xf32>
    %427 = math.exp %426 : vector<2x32xf32>
    %cst_86 = arith.constant 1.000000e+00 : f32
    %428 = vector.broadcast %cst_86 : f32 to vector<2x32xf32>
    %429 = arith.addf %428, %427 : vector<2x32xf32>
    %430 = arith.divf %428, %429 : vector<2x32xf32>
    %431 = arith.mulf %422, %371 : vector<2x32xf32>
    %432 = arith.mulf %416, %424 : vector<2x32xf32>
    %433 = arith.addf %431, %432 : vector<2x32xf32>
    %434 = math.tanh %433 : vector<2x32xf32>
    %435 = arith.mulf %430, %434 : vector<2x32xf32>
    %436 = arith.index_cast %c6_i32 : i32 to index
    %c0_87 = arith.constant 0 : index
    %c0_88 = arith.constant 0 : index
    %437 = vector.load %arg8[%436, %c0_87, %c0_88] : memref<8x2x32xf32, #tpu.memory_space<vmem>>, vector<1x2x32xf32>
    %438 = vector.shape_cast %437 : vector<1x2x32xf32> to vector<2x32xf32>
    %439 = vector.shape_cast %435 : vector<2x32xf32> to vector<1x2x32xf32>
    tpu.vector_store %arg8[%436, %c0_87, %c0_88], %439 {strides = array<i32>} : memref<8x2x32xf32, #tpu.memory_space<vmem>>, vector<1x2x32xf32>,
    %c7_i32 = arith.constant 7 : i32
    %440 = arith.index_cast %c7_i32 : i32 to index
    %c0_89 = arith.constant 0 : index
    %c0_90 = arith.constant 0 : index
    %441 = vector.load %arg1[%440, %c0_89, %c0_90] : memref<8x2x128xf32, #tpu.memory_space<vmem>>, vector<1x2x128xf32>
    %442 = vector.shape_cast %441 : vector<1x2x128xf32> to vector<2x128xf32>
    %cst_91 = arith.constant dense<0.000000e+00> : vector<2x128xf32>
    %443 = tpu.matmul %407, %0, %cst_91 {dimension_numbers = #tpu.dot_dimension_numbers<[1], [0], [0], [1], [0, 0, 1, 1], [], []>} : vector<2x32xf32>, vector<32x128xf32>, vector<2x128xf32> -> vector<2x128xf32>
    %444 = arith.addf %442, %443 : vector<2x128xf32>
    %445 = vector.extract_strided_slice %444 {offsets = [0, 0], sizes = [2, 32], strides = [1, 1]} : vector<2x128xf32> to vector<2x32xf32>
    %446 = arith.negf %445 : vector<2x32xf32>
    %447 = math.exp %446 : vector<2x32xf32>
    %cst_92 = arith.constant 1.000000e+00 : f32
    %448 = vector.broadcast %cst_92 : f32 to vector<2x32xf32>
    %449 = arith.addf %448, %447 : vector<2x32xf32>
    %450 = arith.divf %448, %449 : vector<2x32xf32>
    %451 = vector.extract_strided_slice %444 {offsets = [0, 32], sizes = [2, 32], strides = [1, 1]} : vector<2x128xf32> to vector<2x32xf32>
    %452 = arith.negf %451 : vector<2x32xf32>
    %453 = math.exp %452 : vector<2x32xf32>
    %cst_93 = arith.constant 1.000000e+00 : f32
    %454 = vector.broadcast %cst_93 : f32 to vector<2x32xf32>
    %455 = arith.addf %454, %453 : vector<2x32xf32>
    %456 = arith.divf %454, %455 : vector<2x32xf32>
    %457 = vector.extract_strided_slice %444 {offsets = [0, 64], sizes = [2, 32], strides = [1, 1]} : vector<2x128xf32> to vector<2x32xf32>
    %458 = math.tanh %457 : vector<2x32xf32>
    %459 = vector.extract_strided_slice %444 {offsets = [0, 96], sizes = [2, 32], strides = [1, 1]} : vector<2x128xf32> to vector<2x32xf32>
    %460 = arith.negf %459 : vector<2x32xf32>
    %461 = math.exp %460 : vector<2x32xf32>
    %cst_94 = arith.constant 1.000000e+00 : f32
    %462 = vector.broadcast %cst_94 : f32 to vector<2x32xf32>
    %463 = arith.addf %462, %461 : vector<2x32xf32>
    %464 = arith.divf %462, %463 : vector<2x32xf32>
    %465 = arith.mulf %456, %405 : vector<2x32xf32>
    %466 = arith.mulf %450, %458 : vector<2x32xf32>
    %467 = arith.addf %465, %466 : vector<2x32xf32>
    %468 = math.tanh %467 : vector<2x32xf32>
    %469 = arith.mulf %464, %468 : vector<2x32xf32>
    %470 = tpu.concatenate %469, %435 in 1 : vector<2x32xf32>, vector<2x32xf32> -> vector<2x64xf32>
    %cst_95 = arith.constant dense<0.000000e+00> : vector<2x128xf32>
    %471 = tpu.matmul %470, %1, %cst_95 {dimension_numbers = #tpu.dot_dimension_numbers<[1], [0], [0], [1], [0, 0, 1, 1], [], []>} : vector<2x64xf32>, vector<64x128xf32>, vector<2x128xf32> -> vector<2x128xf32>
    %472 = arith.addf %471, %4 : vector<2x128xf32>
    %473 = vector.extract_strided_slice %472 {offsets = [0, 0], sizes = [2, 32], strides = [1, 1]} : vector<2x128xf32> to vector<2x32xf32>
    %474 = arith.negf %473 : vector<2x32xf32>
    %475 = math.exp %474 : vector<2x32xf32>
    %cst_96 = arith.constant 1.000000e+00 : f32
    %476 = vector.broadcast %cst_96 : f32 to vector<2x32xf32>
    %477 = arith.addf %476, %475 : vector<2x32xf32>
    %478 = arith.divf %476, %477 : vector<2x32xf32>
    %479 = vector.extract_strided_slice %472 {offsets = [0, 32], sizes = [2, 32], strides = [1, 1]} : vector<2x128xf32> to vector<2x32xf32>
    %480 = arith.negf %479 : vector<2x32xf32>
    %481 = math.exp %480 : vector<2x32xf32>
    %cst_97 = arith.constant 1.000000e+00 : f32
    %482 = vector.broadcast %cst_97 : f32 to vector<2x32xf32>
    %483 = arith.addf %482, %481 : vector<2x32xf32>
    %484 = arith.divf %482, %483 : vector<2x32xf32>
    %485 = vector.extract_strided_slice %472 {offsets = [0, 64], sizes = [2, 32], strides = [1, 1]} : vector<2x128xf32> to vector<2x32xf32>
    %486 = math.tanh %485 : vector<2x32xf32>
    %487 = vector.extract_strided_slice %472 {offsets = [0, 96], sizes = [2, 32], strides = [1, 1]} : vector<2x128xf32> to vector<2x32xf32>
    %488 = arith.negf %487 : vector<2x32xf32>
    %489 = math.exp %488 : vector<2x32xf32>
    %cst_98 = arith.constant 1.000000e+00 : f32
    %490 = vector.broadcast %cst_98 : f32 to vector<2x32xf32>
    %491 = arith.addf %490, %489 : vector<2x32xf32>
    %492 = arith.divf %490, %491 : vector<2x32xf32>
    %493 = arith.mulf %484, %433 : vector<2x32xf32>
    %494 = arith.mulf %478, %486 : vector<2x32xf32>
    %495 = arith.addf %493, %494 : vector<2x32xf32>
    %496 = math.tanh %495 : vector<2x32xf32>
    %497 = arith.mulf %492, %496 : vector<2x32xf32>
    %498 = arith.index_cast %c7_i32 : i32 to index
    %c0_99 = arith.constant 0 : index
    %c0_100 = arith.constant 0 : index
    %499 = vector.load %arg8[%498, %c0_99, %c0_100] : memref<8x2x32xf32, #tpu.memory_space<vmem>>, vector<1x2x32xf32>
    %500 = vector.shape_cast %499 : vector<1x2x32xf32> to vector<2x32xf32>
    %501 = vector.shape_cast %497 : vector<2x32xf32> to vector<1x2x32xf32>
    tpu.vector_store %arg8[%498, %c0_99, %c0_100], %501 {strides = array<i32>} : memref<8x2x32xf32, #tpu.memory_space<vmem>>, vector<1x2x32xf32>,
    %c8_i32 = arith.constant 8 : i32
    %c0_101 = arith.constant 0 : index
    %c0_102 = arith.constant 0 : index
    %c0_103 = arith.constant 0 : index
    %502 = vector.load %arg8[%c0_101, %c0_102, %c0_103] : memref<8x2x32xf32, #tpu.memory_space<vmem>>, vector<8x2x32xf32>
    %503 = vector.shape_cast %502 : vector<8x2x32xf32> to vector<16x32xf32>
    %c0_104 = arith.constant 0 : index
    %c0_105 = arith.constant 0 : index
    %504 = vector.load %arg5[%c0_104, %c0_105] : memref<32x4xf32, #tpu.memory_space<vmem>>, vector<32x4xf32>
    %cst_106 = arith.constant dense<0.000000e+00> : vector<16x4xf32>
    %505 = tpu.matmul %503, %504, %cst_106 {dimension_numbers = #tpu.dot_dimension_numbers<[1], [0], [0], [1], [0, 0, 1, 1], [], []>} : vector<16x32xf32>, vector<32x4xf32>, vector<16x4xf32> -> vector<16x4xf32>
    %c0_107 = arith.constant 0 : index
    %c0_108 = arith.constant 0 : index
    %506 = vector.load %arg6[%c0_107, %c0_108] : memref<1x4xf32, #tpu.memory_space<vmem>>, vector<1x4xf32>
    %507 = vector.broadcast %506 : vector<1x4xf32> to vector<16x4xf32>
    %508 = arith.addf %505, %507 : vector<16x4xf32>
    %509 = arith.mulf %508, %508 : vector<16x4xf32>
    %510 = vector.shape_cast %509 : vector<16x4xf32> to vector<8x2x4xf32>
    %cst_109 = arith.constant dense<0.000000e+00> : vector<2xf32>
    %511 = vector.multi_reduction <add>, %510, %cst_109 [0, 2] : vector<8x2x4xf32> to vector<2xf32>
    %512 = vector.shape_cast %511 : vector<2xf32> to vector<1x2x1xf32>
    %cst_110 = arith.constant 9.99999993E-9 : f32
    %513 = vector.broadcast %cst_110 : f32 to vector<1x2x1xf32>
    %514 = arith.addf %512, %513 : vector<1x2x1xf32>
    %cst_111 = arith.constant 8.000000e+00 : f32
    %515 = vector.broadcast %cst_111 : f32 to vector<1x2x1xf32>
    %516 = arith.divf %515, %514 : vector<1x2x1xf32>
    %517 = vector.broadcast %516 : vector<1x2x1xf32> to vector<8x2x4xf32>
    %518 = arith.mulf %510, %517 : vector<8x2x4xf32>
    %c0_112 = arith.constant 0 : index
    %c0_113 = arith.constant 0 : index
    %c0_114 = arith.constant 0 : index
    %519 = vector.load %arg7[%c0_112, %c0_113, %c0_114] : memref<8x2x4xf32, #tpu.memory_space<vmem>>, vector<8x2x4xf32>
    tpu.vector_store %arg7[%c0_112, %c0_113, %c0_114], %518 {strides = array<i32>} : memref<8x2x4xf32, #tpu.memory_space<vmem>>, vector<8x2x4xf32>,
    return
  }
  func.func @transform_0(%arg0: i32) -> (i32, i32, i32) {
    %c0_i32 = arith.constant 0 : i32
    %c0_i32_0 = arith.constant 0 : i32
    %c0_i32_1 = arith.constant 0 : i32
    return %c0_i32, %arg0, %c0_i32_0 : i32, i32, i32
  }
  func.func @transform_1(%arg0: i32) -> (i32, i32) {
    %c0_i32 = arith.constant 0 : i32
    %c0_i32_0 = arith.constant 0 : i32
    %c0_i32_1 = arith.constant 0 : i32
    return %c0_i32, %c0_i32_0 : i32, i32
  }
  func.func @transform_2(%arg0: i32) -> (i32, i32) {
    %c0_i32 = arith.constant 0 : i32
    %c0_i32_0 = arith.constant 0 : i32
    %c0_i32_1 = arith.constant 0 : i32
    return %c0_i32, %c0_i32_0 : i32, i32
  }
  func.func @transform_3(%arg0: i32) -> (i32, i32) {
    %c0_i32 = arith.constant 0 : i32
    %c0_i32_0 = arith.constant 0 : i32
    %c0_i32_1 = arith.constant 0 : i32
    return %c0_i32, %c0_i32_0 : i32, i32
  }
  func.func @transform_4(%arg0: i32) -> (i32, i32) {
    %c0_i32 = arith.constant 0 : i32
    %c0_i32_0 = arith.constant 0 : i32
    %c0_i32_1 = arith.constant 0 : i32
    return %c0_i32, %c0_i32_0 : i32, i32
  }
  func.func @transform_5(%arg0: i32) -> (i32, i32) {
    %c0_i32 = arith.constant 0 : i32
    %c0_i32_0 = arith.constant 0 : i32
    %c0_i32_1 = arith.constant 0 : i32
    return %c0_i32, %c0_i32_0 : i32, i32
  }
  func.func @transform_6(%arg0: i32) -> (i32, i32, i32) {
    %c0_i32 = arith.constant 0 : i32
    %c0_i32_0 = arith.constant 0 : i32
    %c0_i32_1 = arith.constant 0 : i32
    return %c0_i32, %arg0, %c0_i32_0 : i32, i32, i32
  }
}

</mosaic_0001>

<llo_original>
// kernel: tpu_custom_call.1
$region0: #{tpu_custom_call.1}
  #allocation0 [shape = 'u32[]', space=smem, size = 0x4, offset = 0x4, fixed_abs, tag = 'smem constant byte address 0x4 - core index']
  #allocation1 [shape = 'u32[144,128]{1,0:T(1,128)}', space=vmem, size = 0x12000, scoped, tag = 'internal scratch']
  #allocation2 [shape = 'f32[8,2,32]{2,1,0:T(2,128)}', space=vmem, size = 0x2000, scoped, tag = 'scratch operand']
  %s0 = inlined_call_operand.hbm [shape: f32[8,2,128], index: 0, kind: input, shape index: {}]
  %s1 = inlined_call_operand.vmem [shape: f32[32,128], index: 1, kind: input, shape index: {}]
  %s2 = inlined_call_operand.hbm [shape: f32[64,128], index: 2, kind: input, shape index: {}]
  %s3 = inlined_call_operand.vmem [shape: f32[1,128], index: 3, kind: input, shape index: {}]
  %s4 = inlined_call_operand.vmem [shape: f32[32,4], index: 4, kind: input, shape index: {}]
  %s5 = inlined_call_operand.vmem [shape: f32[1,4], index: 5, kind: input, shape index: {}]
  %s6 = inlined_call_operand.vmem [shape: f32[8,2,4], index: 6, kind: output, shape index: {}]
  %s7 = sld [smem:[#allocation0]]
  $region42: #{tpu_custom_call.1} parent=0
    _
  %s9 = ssub.s32 1, %s7
  %s10 = scalar_select 0, %s9, %s7
  $region1: #{tpu_custom_call.1} parent=0
    #allocation3 [shape = 'u8[8192]{0}', space=vmem, size = 0x2000, scoped, tag = 'input window, operand 0, single buffered']
    #allocation4 [shape = 's32[1]{0}', space=sflag, size = 0x4, scoped, tag = 'scoped memory for tpu_custom_call.1']
    #allocation5 [shape = 'u8[32768]{0}', space=vmem, size = 0x8000, scoped, tag = 'input window, operand 2, single buffered']
    #allocation6 [shape = 's32[1]{0}', space=sflag, size = 0x4, scoped, tag = 'scoped memory for tpu_custom_call.1']
    %11 = vsyncpa [#allocation4], 0
    %12 = vsyncpa [#allocation6], 0
    // Predicated region
    $region2: #{tpu_custom_call.1} parent=1 // pred_check
      _
    $region3: #{tpu_custom_call.1} parent=1 // pred_check_branch
      %14 = sbr.rel (0) target = $region5
    $region4: #{tpu_custom_call.1} parent=1 // pred_region
      %s16 = ssub.s32 256, 256
      %17 = vsyncadd [#allocation4], %s16
      %s18 = sshll.u32 [#allocation3], 4
      %s19 = int_to_ptr.vmem [resolvable:$true] %s18
      %24 = dma.hbm_to_vmem [thread:$0]  %s0, 256, %s19, [#allocation4], 32, 32, 2
    $region5: #{tpu_custom_call.1} parent=1 // pred_fallthru
      _
    // Predicated region
    $region6: #{tpu_custom_call.1} parent=1 // pred_check
      _
    $region7: #{tpu_custom_call.1} parent=1 // pred_check_branch
      %26 = sbr.rel (0) target = $region9
    $region8: #{tpu_custom_call.1} parent=1 // pred_region
      _
    $region9: #{tpu_custom_call.1} parent=1 // pred_fallthru
      _
    // Predicated region
    $region10: #{tpu_custom_call.1} parent=1 // pred_check
      _
    $region11: #{tpu_custom_call.1} parent=1 // pred_check_branch
      %28 = sbr.rel (0) target = $region13
    $region12: #{tpu_custom_call.1} parent=1 // pred_region
      %s30 = ssub.s32 1024, 1024
      %31 = vsyncadd [#allocation6], %s30
      %s32 = sshll.u32 [#allocation5], 4
      %s33 = int_to_ptr.vmem [resolvable:$true] %s32
      %38 = dma.hbm_to_vmem [thread:$0]  %s2, 1024, %s33, [#allocation6], 128, 128, 8
    $region13: #{tpu_custom_call.1} parent=1 // pred_fallthru
      _
    // Predicated region
    $region14: #{tpu_custom_call.1} parent=1 // pred_check
      _
    $region15: #{tpu_custom_call.1} parent=1 // pred_check_branch
      %40 = sbr.rel (0) target = $region17
    $region16: #{tpu_custom_call.1} parent=1 // pred_region
      _
    $region17: #{tpu_custom_call.1} parent=1 // pred_fallthru
      _
    // Predicated region
    $region18: #{tpu_custom_call.1} parent=1 // pred_check
      _
    $region19: #{tpu_custom_call.1} parent=1 // pred_check_branch
      %42 = sbr.rel (0) target = $region21
    $region20: #{tpu_custom_call.1} parent=1 // pred_region
      _
    $region21: #{tpu_custom_call.1} parent=1 // pred_fallthru
      _
    // Predicated region
    $region22: #{tpu_custom_call.1} parent=1 // pred_check
      _
    $region23: #{tpu_custom_call.1} parent=1 // pred_check_branch
      %44 = sbr.rel (0) target = $region25
    $region24: #{tpu_custom_call.1} parent=1 // pred_region
      _
    $region25: #{tpu_custom_call.1} parent=1 // pred_fallthru
      _
    // Predicated region
    $region26: #{tpu_custom_call.1} parent=1 // pred_check
      _
    $region27: #{tpu_custom_call.1} parent=1 // pred_check_branch
      %46 = sbr.rel (0) target = $region29
    $region28: #{tpu_custom_call.1} parent=1 // pred_region
      %47 = dma.done [#allocation4], 256
    $region29: #{tpu_custom_call.1} parent=1 // pred_fallthru
      _
    // Predicated region
    $region30: #{tpu_custom_call.1} parent=1 // pred_check
      _
    $region31: #{tpu_custom_call.1} parent=1 // pred_check_branch
      %49 = sbr.rel (0) target = $region33
    $region32: #{tpu_custom_call.1} parent=1 // pred_region
      %50 = dma.done [#allocation6], 1024
    $region33: #{tpu_custom_call.1} parent=1 // pred_fallthru
      _
    %v51 = vld [vmem:[%s1] sm:$0xff]
    %v52 = vld [vmem:[%s1 + $0x8] sm:$0xff]
    %v53 = vld [vmem:[%s1 + $0x10] sm:$0xff]
    %v54 = vld [vmem:[%s1 + $0x18] sm:$0xff]
    %v55 = vld [vmem:[#allocation5] sm:$0xff]
    %v56 = vld [vmem:[#allocation5 + $0x8] sm:$0xff]
    %v57 = vld [vmem:[#allocation5 + $0x10] sm:$0xff]
    %v58 = vld [vmem:[#allocation5 + $0x18] sm:$0xff]
    %v59 = vld [vmem:[#allocation5 + $0x20] sm:$0xff]
    %v60 = vld [vmem:[#allocation5 + $0x28] sm:$0xff]
    %v61 = vld [vmem:[#allocation5 + $0x30] sm:$0xff]
    %v62 = vld [vmem:[#allocation5 + $0x38] sm:$0xff]
    %v63 = vld [vmem:[%s3] sm:$0x1]
    %v65 = vlaneseq
    %v66 = vshrl.u32 %v65, 7
    %v67 = vsub.s32 0, %v66
    %v68 = vrot.slane %v63, %v67
    %v70 = vld [vmem:[#allocation3] sm:$0x3]
    %vm71 = vcmask 261120
    %v73 = vsel %vm71, 0.0, 0
    %75 = vmatprep.subr.mxu0 0.0
    %76 = vmatpush1.msra.mxu0 %v51
    %77 = vmatprep.subr.mxu0 0.0
    %78 = vmatpush1.msra.mxu0 %v52
    %79 = vmatprep.subr.mxu0 0.0
    %80 = vmatpush1.msra.mxu0 %v53
    %81 = vmatprep.subr.mxu0 0.0
    %82 = vmatpush1.msra.mxu0 %v54
    %83 = vmatprep.subr.mxu0 0.0
    %84 = vmatpush1.msra.mxu0 0.0
    %85 = vmatprep.subr.mxu0 0.0
    %86 = vmatpush1.msra.mxu0 0.0
    %87 = vmatprep.subr.mxu0 0.0
    %88 = vmatpush1.msra.mxu0 0.0
    %89 = vmatprep.subr.mxu0 0.0
    %90 = vmatpush1.msra.mxu0 0.0
    %91 = vmatprep.subr.mxu0 0.0
    %92 = vmatpush1.msra.mxu0 0.0
    %93 = vmatprep.subr.mxu0 0.0
    %94 = vmatpush1.msra.mxu0 0.0
    %95 = vmatprep.subr.mxu0 0.0
    %96 = vmatpush1.msra.mxu0 0.0
    %97 = vmatprep.subr.mxu0 0.0
    %98 = vmatpush1.msra.mxu0 0.0
    %99 = vmatprep.subr.mxu0 0.0
    %100 = vmatpush1.msra.mxu0 0.0
    %101 = vmatprep.subr.mxu0 0.0
    %102 = vmatpush1.msra.mxu0 0.0
    %103 = vmatprep.subr.mxu0 0.0
    %104 = vmatpush1.msra.mxu0 0.0
    %105 = vmatprep.subr.mxu0 0.0
    %106 = vmatpush1.msra.mxu0 0.0
    %107 = vmatprep.subr.mxu0 0.0
    %108 = vmatpush1.msra.mxu0 0.0
    %109 = vmatprep.subr.mxu0 0.0
    %110 = vmatpush1.msra.mxu0 0.0
    %111 = vmatprep.subr.mxu0 0.0
    %112 = vmatpush1.msra.mxu0 0.0
    %113 = vmatprep.subr.mxu0 0.0
    %114 = vmatpush1.msra.mxu0 0.0
    %115 = vmatprep.subr.mxu0 0.0
    %116 = vmatpush1.msra.mxu0 0.0
    %117 = vmatprep.subr.mxu0 0.0
    %118 = vmatpush1.msra.mxu0 0.0
    %119 = vmatprep.subr.mxu0 0.0
    %120 = vmatpush1.msra.mxu0 0.0
    %121 = vmatprep.subr.mxu0 0.0
    %122 = vmatpush1.msra.mxu0 0.0
    %123 = vmatprep.subr.mxu0 0.0
    %124 = vmatpush1.msra.mxu0 0.0
    %125 = vmatprep.subr.mxu0 0.0
    %126 = vmatpush1.msra.mxu0 0.0
    %127 = vmatprep.subr.mxu0 0.0
    %128 = vmatpush1.msra.mxu0 0.0
    %129 = vmatprep.subr.mxu0 0.0
    %130 = vmatpush1.msra.mxu0 0.0
    %131 = vmatprep.subr.mxu0 0.0
    %132 = vmatpush1.msra.mxu0 0.0
    %133 = vmatprep.subr.mxu0 0.0
    %134 = vmatpush1.msra.mxu0 0.0
    %135 = vmatprep.subr.mxu0 0.0
    %136 = vmatpush1.msra.mxu0 0.0
    %137 = vmatprep.subr.mxu0 0.0
    %138 = vmatpush1.msra.mxu0 0.0
    %139 = vmatprep.mubr.f32.mxu0 0.0
    %140 = vmatmul.mubr.f32.gmra.mrb[0].mxu0 %v73
    %v141 = vpop.f32.mrb[0].mxu0
    %v142 = vadd.f32 0.0, %v141
    %v143 = vpop.f32.mrb[0].mxu0
    %144 = vdwg.mxu0
    %v145 = vadd.f32 %v70, %v142
    %v146 = vxor.u32 %v145, 2147483648
    %v147 = vmul.f32 %v146, 1.442695
    %v148 = vpow.pop %v147
    %v149 = vadd.f32 %v148, 1.0
    %v150 = vrcp.pop %v149
    %v151 = vmul.f32 1.0, %v150
    %v152 = vtanh.pop %v145
    %v153 = vmul.f32 %v151, 0.0
    %155 = vrot.lane.b32.xlu0 %v152, 64
    %v156 = vpop.permute.xlu0 %155
    %v158 = vmul.f32 %v151, %v156
    %160 = vrot.lane.b32.xlu0 %v158, 32
    %v161 = vpop.permute.xlu0 %160
    %v163 = vadd.f32 %v153, %v161
    %v164 = vtanh.pop %v163
    %166 = vrot.lane.b32.xlu0 %v164, 64
    %v167 = vpop.permute.xlu0 %166
    %v169 = vmul.f32 %v151, %v167
    %171 = vrot.lane.b32.xlu0 %v169, 32
    %v172 = vpop.permute.xlu0 %171
    %v174 = vsel %vm71, %v172, 0.0
    %vm175 = vcmask 523264
    %v177 = vsel %vm175, %v174, 0
    %179 = vmatprep.subr.mxu0 0.0
    %180 = vmatpush1.msra.mxu0 %v55
    %181 = vmatprep.subr.mxu0 0.0
    %182 = vmatpush1.msra.mxu0 %v56
    %183 = vmatprep.subr.mxu0 0.0
    %184 = vmatpush1.msra.mxu0 %v57
    %185 = vmatprep.subr.mxu0 0.0
    %186 = vmatpush1.msra.mxu0 %v58
    %187 = vmatprep.subr.mxu0 0.0
    %188 = vmatpush1.msra.mxu0 %v59
    %189 = vmatprep.subr.mxu0 0.0
    %190 = vmatpush1.msra.mxu0 %v60
    %191 = vmatprep.subr.mxu0 0.0
    %192 = vmatpush1.msra.mxu0 %v61
    %193 = vmatprep.subr.mxu0 0.0
    %194 = vmatpush1.msra.mxu0 %v62
    %195 = vmatprep.subr.mxu0 0.0
    %196 = vmatpush1.msra.mxu0 0.0
    %197 = vmatprep.subr.mxu0 0.0
    %198 = vmatpush1.msra.mxu0 0.0
    %199 = vmatprep.subr.mxu0 0.0
    %200 = vmatpush1.msra.mxu0 0.0
    %201 = vmatprep.subr.mxu0 0.0
    %202 = vmatpush1.msra.mxu0 0.0
    %203 = vmatprep.subr.mxu0 0.0
    %204 = vmatpush1.msra.mxu0 0.0
    %205 = vmatprep.subr.mxu0 0.0
    %206 = vmatpush1.msra.mxu0 0.0
    %207 = vmatprep.subr.mxu0 0.0
    %208 = vmatpush1.msra.mxu0 0.0
    %209 = vmatprep.subr.mxu0 0.0
    %210 = vmatpush1.msra.mxu0 0.0
    %211 = vmatprep.subr.mxu0 0.0
    %212 = vmatpush1.msra.mxu0 0.0
    %213 = vmatprep.subr.mxu0 0.0
    %214 = vmatpush1.msra.mxu0 0.0
    %215 = vmatprep.subr.mxu0 0.0
    %216 = vmatpush1.msra.mxu0 0.0
    %217 = vmatprep.subr.mxu0 0.0
    %218 = vmatpush1.msra.mxu0 0.0
    %219 = vmatprep.subr.mxu0 0.0
    %220 = vmatpush1.msra.mxu0 0.0
    %221 = vmatprep.subr.mxu0 0.0
    %222 = vmatpush1.msra.mxu0 0.0
    %223 = vmatprep.subr.mxu0 0.0
    %224 = vmatpush1.msra.mxu0 0.0
    %225 = vmatprep.subr.mxu0 0.0
    %226 = vmatpush1.msra.mxu0 0.0
    %227 = vmatprep.subr.mxu0 0.0
    %228 = vmatpush1.msra.mxu0 0.0
    %229 = vmatprep.subr.mxu0 0.0
    %230 = vmatpush1.msra.mxu0 0.0
    %231 = vmatprep.subr.mxu0 0.0
    %232 = vmatpush1.msra.mxu0 0.0
    %233 = vmatprep.subr.mxu0 0.0
    %234 = vmatpush1.msra.mxu0 0.0
    %235 = vmatprep.subr.mxu0 0.0
    %236 = vmatpush1.msra.mxu0 0.0
    %237 = vmatprep.subr.mxu0 0.0
    %238 = vmatpush1.msra.mxu0 0.0
    %239 = vmatprep.subr.mxu0 0.0
    %240 = vmatpush1.msra.mxu0 0.0
    %241 = vmatprep.subr.mxu0 0.0
    %242 = vmatpush1.msra.mxu0 0.0
    %243 = vmatprep.mubr.f32.mxu0 0.0
    %244 = vmatmul.mubr.f32.gmra.mrb[0].mxu0 %v177
    %v245 = vpop.f32.mrb[0].mxu0
    %v246 = vadd.f32 %v68, %v245
    %v247 = vpop.f32.mrb[0].mxu0
    %248 = vdwg.mxu0
    %v249 = vxor.u32 %v246, 2147483648
    %v250 = vmul.f32 %v249, 1.442695
    %v251 = vpow.pop %v250
    %v252 = vadd.f32 %v251, 1.0
    %v253 = vrcp.pop %v252
    %v254 = vmul.f32 1.0, %v253
    %v255 = vtanh.pop %v246
    %v256 = vmul.f32 %v254, 0.0
    %258 = vrot.lane.b32.xlu0 %v255, 64
    %v259 = vpop.permute.xlu0 %258
    %v261 = vmul.f32 %v254, %v259
    %263 = vrot.lane.b32.xlu0 %v261, 32
    %v264 = vpop.permute.xlu0 %263
    %v266 = vadd.f32 %v256, %v264
    %v267 = vtanh.pop %v266
    %269 = vrot.lane.b32.xlu0 %v267, 64
    %v270 = vpop.permute.xlu0 %269
    %v272 = vmul.f32 %v254, %v270
    %274 = vrot.lane.b32.xlu0 %v272, 32
    %v275 = vpop.permute.xlu0 %274
    %vm277 = vcmask 254976
    %278 = vst.msk [vmem:[#allocation2] sm:$0x3] %vm277, %v275
    %s279 = scalar_lea.vmem [#allocation3], 2
    %v280 = vld [vmem:[%s279] sm:$0x3]
    %v281 = vsel %vm71, %v172, 0
    %283 = vmatprep.subr.mxu0 0.0
    %284 = vmatpush1.msra.mxu0 %v51
    %285 = vmatprep.subr.mxu0 0.0
    %286 = vmatpush1.msra.mxu0 %v52
    %287 = vmatprep.subr.mxu0 0.0
    %288 = vmatpush1.msra.mxu0 %v53
    %289 = vmatprep.subr.mxu0 0.0
    %290 = vmatpush1.msra.mxu0 %v54
    %291 = vmatprep.subr.mxu0 0.0
    %292 = vmatpush1.msra.mxu0 0.0
    %293 = vmatprep.subr.mxu0 0.0
    %294 = vmatpush1.msra.mxu0 0.0
    %295 = vmatprep.subr.mxu0 0.0
    %296 = vmatpush1.msra.mxu0 0.0
    %297 = vmatprep.subr.mxu0 0.0
    %298 = vmatpush1.msra.mxu0 0.0
    %299 = vmatprep.subr.mxu0 0.0
    %300 = vmatpush1.msra.mxu0 0.0
    %301 = vmatprep.subr.mxu0 0.0
    %302 = vmatpush1.msra.mxu0 0.0
    %303 = vmatprep.subr.mxu0 0.0
    %304 = vmatpush1.msra.mxu0 0.0
    %305 = vmatprep.subr.mxu0 0.0
    %306 = vmatpush1.msra.mxu0 0.0
    %307 = vmatprep.subr.mxu0 0.0
    %308 = vmatpush1.msra.mxu0 0.0
    %309 = vmatprep.subr.mxu0 0.0
    %310 = vmatpush1.msra.mxu0 0.0
    %311 = vmatprep.subr.mxu0 0.0
    %312 = vmatpush1.msra.mxu0 0.0
    %313 = vmatprep.subr.mxu0 0.0
    %314 = vmatpush1.msra.mxu0 0.0
    %315 = vmatprep.subr.mxu0 0.0
    %316 = vmatpush1.msra.mxu0 0.0
    %317 = vmatprep.subr.mxu0 0.0
    %318 = vmatpush1.msra.mxu0 0.0
    %319 = vmatprep.subr.mxu0 0.0
    %320 = vmatpush1.msra.mxu0 0.0
    %321 = vmatprep.subr.mxu0 0.0
    %322 = vmatpush1.msra.mxu0 0.0
    %323 = vmatprep.subr.mxu0 0.0
    %324 = vmatpush1.msra.mxu0 0.0
    %325 = vmatprep.subr.mxu0 0.0
    %326 = vmatpush1.msra.mxu0 0.0
    %327 = vmatprep.subr.mxu0 0.0
    %328 = vmatpush1.msra.mxu0 0.0
    %329 = vmatprep.subr.mxu0 0.0
    %330 = vmatpush1.msra.mxu0 0.0
    %331 = vmatprep.subr.mxu0 0.0
    %332 = vmatpush1.msra.mxu0 0.0
    %333 = vmatprep.subr.mxu0 0.0
    %334 = vmatpush1.msra.mxu0 0.0
    %335 = vmatprep.subr.mxu0 0.0
    %336 = vmatpush1.msra.mxu0 0.0
    %337 = vmatprep.subr.mxu0 0.0
    %338 = vmatpush1.msra.mxu0 0.0
    %339 = vmatprep.subr.mxu0 0.0
    %340 = vmatpush1.msra.mxu0 0.0
    %341 = vmatprep.subr.mxu0 0.0
    %342 = vmatpush1.msra.mxu0 0.0
    %343 = vmatprep.subr.mxu0 0.0
    %344 = vmatpush1.msra.mxu0 0.0
    %345 = vmatprep.subr.mxu0 0.0
    %346 = vmatpush1.msra.mxu0 0.0
    %347 = vmatprep.mubr.f32.mxu0 0.0
    %348 = vmatmul.mubr.f32.gmra.mrb[0].mxu0 %v281
    %v349 = vpop.f32.mrb[0].mxu0
    %v350 = vadd.f32 0.0, %v349
    %v351 = vpop.f32.mrb[0].mxu0
    %352 = vdwg.mxu0
    %v353 = vadd.f32 %v280, %v350
    %v354 = vxor.u32 %v353, 2147483648
    %v355 = vmul.f32 %v354, 1.442695
    %v356 = vpow.pop %v355
    %v357 = vadd.f32 %v356, 1.0
    %v358 = vrcp.pop %v357
    %v359 = vmul.f32 1.0, %v358
    %v360 = vtanh.pop %v353
    %v361 = vmul.f32 %v359, %v163
    %363 = vrot.lane.b32.xlu0 %v360, 64
    %v364 = vpop.permute.xlu0 %363
    %v366 = vmul.f32 %v359, %v364
    %368 = vrot.lane.b32.xlu0 %v366, 32
    %v369 = vpop.permute.xlu0 %368
    %v371 = vadd.f32 %v361, %v369
    %v372 = vtanh.pop %v371
    %374 = vrot.lane.b32.xlu0 %v372, 64
    %v375 = vpop.permute.xlu0 %374
    %v377 = vmul.f32 %v359, %v375
    %379 = vrot.lane.b32.xlu0 %v377, 32
    %v380 = vpop.permute.xlu0 %379
    %382 = vrot.lane.b32.xlu0 %v272, 64
    %v383 = vpop.permute.xlu0 %382
    %v385 = vsel %vm71, %v380, %v383
    %v387 = vsel %vm175, %v385, 0
    %389 = vmatprep.subr.mxu0 0.0
    %390 = vmatpush1.msra.mxu0 %v55
    %391 = vmatprep.subr.mxu0 0.0
    %392 = vmatpush1.msra.mxu0 %v56
    %393 = vmatprep.subr.mxu0 0.0
    %394 = vmatpush1.msra.mxu0 %v57
    %395 = vmatprep.subr.mxu0 0.0
    %396 = vmatpush1.msra.mxu0 %v58
    %397 = vmatprep.subr.mxu0 0.0
    %398 = vmatpush1.msra.mxu0 %v59
    %399 = vmatprep.subr.mxu0 0.0
    %400 = vmatpush1.msra.mxu0 %v60
    %401 = vmatprep.subr.mxu0 0.0
    %402 = vmatpush1.msra.mxu0 %v61
    %403 = vmatprep.subr.mxu0 0.0
    %404 = vmatpush1.msra.mxu0 %v62
    %405 = vmatprep.subr.mxu0 0.0
    %406 = vmatpush1.msra.mxu0 0.0
    %407 = vmatprep.subr.mxu0 0.0
    %408 = vmatpush1.msra.mxu0 0.0
    %409 = vmatprep.subr.mxu0 0.0
    %410 = vmatpush1.msra.mxu0 0.0
    %411 = vmatprep.subr.mxu0 0.0
    %412 = vmatpush1.msra.mxu0 0.0
    %413 = vmatprep.subr.mxu0 0.0
    %414 = vmatpush1.msra.mxu0 0.0
    %415 = vmatprep.subr.mxu0 0.0
    %416 = vmatpush1.msra.mxu0 0.0
    %417 = vmatprep.subr.mxu0 0.0
    %418 = vmatpush1.msra.mxu0 0.0
    %419 = vmatprep.subr.mxu0 0.0
    %420 = vmatpush1.msra.mxu0 0.0
    %421 = vmatprep.subr.mxu0 0.0
    %422 = vmatpush1.msra.mxu0 0.0
    %423 = vmatprep.subr.mxu0 0.0
    %424 = vmatpush1.msra.mxu0 0.0
    %425 = vmatprep.subr.mxu0 0.0
    %426 = vmatpush1.msra.mxu0 0.0
    %427 = vmatprep.subr.mxu0 0.0
    %428 = vmatpush1.msra.mxu0 0.0
    %429 = vmatprep.subr.mxu0 0.0
    %430 = vmatpush1.msra.mxu0 0.0
    %431 = vmatprep.subr.mxu0 0.0
    %432 = vmatpush1.msra.mxu0 0.0
    %433 = vmatprep.subr.mxu0 0.0
    %434 = vmatpush1.msra.mxu0 0.0
    %435 = vmatprep.subr.mxu0 0.0
    %436 = vmatpush1.msra.mxu0 0.0
    %437 = vmatprep.subr.mxu0 0.0
    %438 = vmatpush1.msra.mxu0 0.0
    %439 = vmatprep.subr.mxu0 0.0
    %440 = vmatpush1.msra.mxu0 0.0
    %441 = vmatprep.subr.mxu0 0.0
    %442 = vmatpush1.msra.mxu0 0.0
    %443 = vmatprep.subr.mxu0 0.0
    %444 = vmatpush1.msra.mxu0 0.0
    %445 = vmatprep.subr.mxu0 0.0
    %446 = vmatpush1.msra.mxu0 0.0
    %447 = vmatprep.subr.mxu0 0.0
    %448 = vmatpush1.msra.mxu0 0.0
    %449 = vmatprep.subr.mxu0 0.0
    %450 = vmatpush1.msra.mxu0 0.0
    %451 = vmatprep.subr.mxu0 0.0
    %452 = vmatpush1.msra.mxu0 0.0
    %453 = vmatprep.mubr.f32.mxu0 0.0
    %454 = vmatmul.mubr.f32.gmra.mrb[0].mxu0 %v387
    %v455 = vpop.f32.mrb[0].mxu0
    %v456 = vadd.f32 %v68, %v455
    %v457 = vpop.f32.mrb[0].mxu0
    %458 = vdwg.mxu0
    %v459 = vxor.u32 %v456, 2147483648
    %v460 = vmul.f32 %v459, 1.442695
    %v461 = vpow.pop %v460
    %v462 = vadd.f32 %v461, 1.0
    %v463 = vrcp.pop %v462
    %v464 = vmul.f32 1.0, %v463
    %v465 = vtanh.pop %v456
    %v466 = vmul.f32 %v464, %v266
    %468 = vrot.lane.b32.xlu0 %v465, 64
    %v469 = vpop.permute.xlu0 %468
    %v471 = vmul.f32 %v464, %v469
    %473 = vrot.lane.b32.xlu0 %v471, 32
    %v474 = vpop.permute.xlu0 %473
    %v476 = vadd.f32 %v466, %v474
    %v477 = vtanh.pop %v476
    %479 = vrot.lane.b32.xlu0 %v477, 64
    %v480 = vpop.permute.xlu0 %479
    %v482 = vmul.f32 %v464, %v480
    %484 = vrot.lane.b32.xlu0 %v482, 32
    %v485 = vpop.permute.xlu0 %484
    %s487 = scalar_lea.vmem [#allocation2], 2
    %488 = vst.msk [vmem:[%s487] sm:$0x3] %vm277, %v485
    %s489 = scalar_lea.vmem [#allocation3], 4
    %v490 = vld [vmem:[%s489] sm:$0x3]
    %v491 = vsel %vm71, %v380, 0
    %493 = vmatprep.subr.mxu0 0.0
    %494 = vmatpush1.msra.mxu0 %v51
    %495 = vmatprep.subr.mxu0 0.0
    %496 = vmatpush1.msra.mxu0 %v52
    %497 = vmatprep.subr.mxu0 0.0
    %498 = vmatpush1.msra.mxu0 %v53
    %499 = vmatprep.subr.mxu0 0.0
    %500 = vmatpush1.msra.mxu0 %v54
    %501 = vmatprep.subr.mxu0 0.0
    %502 = vmatpush1.msra.mxu0 0.0
    %503 = vmatprep.subr.mxu0 0.0
    %504 = vmatpush1.msra.mxu0 0.0
    %505 = vmatprep.subr.mxu0 0.0
    %506 = vmatpush1.msra.mxu0 0.0
    %507 = vmatprep.subr.mxu0 0.0
    %508 = vmatpush1.msra.mxu0 0.0
    %509 = vmatprep.subr.mxu0 0.0
    %510 = vmatpush1.msra.mxu0 0.0
    %511 = vmatprep.subr.mxu0 0.0
    %512 = vmatpush1.msra.mxu0 0.0
    %513 = vmatprep.subr.mxu0 0.0
    %514 = vmatpush1.msra.mxu0 0.0
    %515 = vmatprep.subr.mxu0 0.0
    %516 = vmatpush1.msra.mxu0 0.0
    %517 = vmatprep.subr.mxu0 0.0
    %518 = vmatpush1.msra.mxu0 0.0
    %519 = vmatprep.subr.mxu0 0.0
    %520 = vmatpush1.msra.mxu0 0.0
    %521 = vmatprep.subr.mxu0 0.0
    %522 = vmatpush1.msra.mxu0 0.0
    %523 = vmatprep.subr.mxu0 0.0
    %524 = vmatpush1.msra.mxu0 0.0
    %525 = vmatprep.subr.mxu0 0.0
    %526 = vmatpush1.msra.mxu0 0.0
    %527 = vmatprep.subr.mxu0 0.0
    %528 = vmatpush1.msra.mxu0 0.0
    %529 = vmatprep.subr.mxu0 0.0
    %530 = vmatpush1.msra.mxu0 0.0
    %531 = vmatprep.subr.mxu0 0.0
    %532 = vmatpush1.msra.mxu0 0.0
    %533 = vmatprep.subr.mxu0 0.0
    %534 = vmatpush1.msra.mxu0 0.0
    %535 = vmatprep.subr.mxu0 0.0
    %536 = vmatpush1.msra.mxu0 0.0
    %537 = vmatprep.subr.mxu0 0.0
    %538 = vmatpush1.msra.mxu0 0.0
    %539 = vmatprep.subr.mxu0 0.0
    %540 = vmatpush1.msra.mxu0 0.0
    %541 = vmatprep.subr.mxu0 0.0
    %542 = vmatpush1.msra.mxu0 0.0
    %543 = vmatprep.subr.mxu0 0.0
    %544 = vmatpush1.msra.mxu0 0.0
    %545 = vmatprep.subr.mxu0 0.0
    %546 = vmatpush1.msra.mxu0 0.0
    %547 = vmatprep.subr.mxu0 0.0
    %548 = vmatpush1.msra.mxu0 0.0
    %549 = vmatprep.subr.mxu0 0.0
    %550 = vmatpush1.msra.mxu0 0.0
    %551 = vmatprep.subr.mxu0 0.0
    %552 = vmatpush1.msra.mxu0 0.0
    %553 = vmatprep.subr.mxu0 0.0
    %554 = vmatpush1.msra.mxu0 0.0
    %555 = vmatprep.subr.mxu0 0.0
    %556 = vmatpush1.msra.mxu0 0.0
    %557 = vmatprep.mubr.f32.mxu0 0.0
    %558 = vmatmul.mubr.f32.gmra.mrb[0].mxu0 %v491
    %v559 = vpop.f32.mrb[0].mxu0
    %v560 = vadd.f32 0.0, %v559
    %v561 = vpop.f32.mrb[0].mxu0
    %562 = vdwg.mxu0
    %v563 = vadd.f32 %v490, %v560
    %v564 = vxor.u32 %v563, 2147483648
    %v565 = vmul.f32 %v564, 1.442695
    %v566 = vpow.pop %v565
    %v567 = vadd.f32 %v566, 1.0
    %v568 = vrcp.pop %v567
    %v569 = vmul.f32 1.0, %v568
    %v570 = vtanh.pop %v563
    %v571 = vmul.f32 %v569, %v371
    %573 = vrot.lane.b32.xlu0 %v570, 64
    %v574 = vpop.permute.xlu0 %573
    %v576 = vmul.f32 %v569, %v574
    %578 = vrot.lane.b32.xlu0 %v576, 32
    %v579 = vpop.permute.xlu0 %578
    %v581 = vadd.f32 %v571, %v579
    %v582 = vtanh.pop %v581
    %584 = vrot.lane.b32.xlu0 %v582, 64
    %v585 = vpop.permute.xlu0 %584
    %v587 = vmul.f32 %v569, %v585
    %589 = vrot.lane.b32.xlu0 %v587, 32
    %v590 = vpop.permute.xlu0 %589
    %592 = vrot.lane.b32.xlu0 %v482, 64
    %v593 = vpop.permute.xlu0 %592
    %v595 = vsel %vm71, %v590, %v593
    %v597 = vsel %vm175, %v595, 0
    %599 = vmatprep.subr.mxu0 0.0
    %600 = vmatpush1.msra.mxu0 %v55
    %601 = vmatprep.subr.mxu0 0.0
    %602 = vmatpush1.msra.mxu0 %v56
    %603 = vmatprep.subr.mxu0 0.0
    %604 = vmatpush1.msra.mxu0 %v57
    %605 = vmatprep.subr.mxu0 0.0
    %606 = vmatpush1.msra.mxu0 %v58
    %607 = vmatprep.subr.mxu0 0.0
    %608 = vmatpush1.msra.mxu0 %v59
    %609 = vmatprep.subr.mxu0 0.0
    %610 = vmatpush1.msra.mxu0 %v60
    %611 = vmatprep.subr.mxu0 0.0
    %612 = vmatpush1.msra.mxu0 %v61
    %613 = vmatprep.subr.mxu0 0.0
    %614 = vmatpush1.msra.mxu0 %v62
    %615 = vmatprep.subr.mxu0 0.0
    %616 = vmatpush1.msra.mxu0 0.0
    %617 = vmatprep.subr.mxu0 0.0
    %618 = vmatpush1.msra.mxu0 0.0
    %619 = vmatprep.subr.mxu0 0.0
    %620 = vmatpush1.msra.mxu0 0.0
    %621 = vmatprep.subr.mxu0 0.0
    %622 = vmatpush1.msra.mxu0 0.0
    %623 = vmatprep.subr.mxu0 0.0
    %624 = vmatpush1.msra.mxu0 0.0
    %625 = vmatprep.subr.mxu0 0.0
    %626 = vmatpush1.msra.mxu0 0.0
    %627 = vmatprep.subr.mxu0 0.0
    %628 = vmatpush1.msra.mxu0 0.0
    %629 = vmatprep.subr.mxu0 0.0
    %630 = vmatpush1.msra.mxu0 0.0
    %631 = vmatprep.subr.mxu0 0.0
    %632 = vmatpush1.msra.mxu0 0.0
    %633 = vmatprep.subr.mxu0 0.0
    %634 = vmatpush1.msra.mxu0 0.0
    %635 = vmatprep.subr.mxu0 0.0
    %636 = vmatpush1.msra.mxu0 0.0
    %637 = vmatprep.subr.mxu0 0.0
    %638 = vmatpush1.msra.mxu0 0.0
    %639 = vmatprep.subr.mxu0 0.0
    %640 = vmatpush1.msra.mxu0 0.0
    %641 = vmatprep.subr.mxu0 0.0
    %642 = vmatpush1.msra.mxu0 0.0
    %643 = vmatprep.subr.mxu0 0.0
    %644 = vmatpush1.msra.mxu0 0.0
    %645 = vmatprep.subr.mxu0 0.0
    %646 = vmatpush1.msra.mxu0 0.0
    %647 = vmatprep.subr.mxu0 0.0
    %648 = vmatpush1.msra.mxu0 0.0
    %649 = vmatprep.subr.mxu0 0.0
    %650 = vmatpush1.msra.mxu0 0.0
    %651 = vmatprep.subr.mxu0 0.0
    %652 = vmatpush1.msra.mxu0 0.0
    %653 = vmatprep.subr.mxu0 0.0
    %654 = vmatpush1.msra.mxu0 0.0
    %655 = vmatprep.subr.mxu0 0.0
    %656 = vmatpush1.msra.mxu0 0.0
    %657 = vmatprep.subr.mxu0 0.0
    %658 = vmatpush1.msra.mxu0 0.0
    %659 = vmatprep.subr.mxu0 0.0
    %660 = vmatpush1.msra.mxu0 0.0
    %661 = vmatprep.subr.mxu0 0.0
    %662 = vmatpush1.msra.mxu0 0.0
    %663 = vmatprep.mubr.f32.mxu0 0.0
    %664 = vmatmul.mubr.f32.gmra.mrb[0].mxu0 %v597
    %v665 = vpop.f32.mrb[0].mxu0
    %v666 = vadd.f32 %v68, %v665
    %v667 = vpop.f32.mrb[0].mxu0
    %668 = vdwg.mxu0
    %v669 = vxor.u32 %v666, 2147483648
    %v670 = vmul.f32 %v669, 1.442695
    %v671 = vpow.pop %v670
    %v672 = vadd.f32 %v671, 1.0
    %v673 = vrcp.pop %v672
    %v674 = vmul.f32 1.0, %v673
    %v675 = vtanh.pop %v666
    %v676 = vmul.f32 %v674, %v476
    %678 = vrot.lane.b32.xlu0 %v675, 64
    %v679 = vpop.permute.xlu0 %678
    %v681 = vmul.f32 %v674, %v679
    %683 = vrot.lane.b32.xlu0 %v681, 32
    %v684 = vpop.permute.xlu0 %683
    %v686 = vadd.f32 %v676, %v684
    %v687 = vtanh.pop %v686
    %689 = vrot.lane.b32.xlu0 %v687, 64
    %v690 = vpop.permute.xlu0 %689
    %v692 = vmul.f32 %v674, %v690
    %694 = vrot.lane.b32.xlu0 %v692, 32
    %v695 = vpop.permute.xlu0 %694
    %s697 = scalar_lea.vmem [#allocation2], 4
    %698 = vst.msk [vmem:[%s697] sm:$0x3] %vm277, %v695
    %s699 = scalar_lea.vmem [#allocation3], 6
    %v700 = vld [vmem:[%s699] sm:$0x3]
    %v701 = vsel %vm71, %v590, 0
    %703 = vmatprep.subr.mxu0 0.0
    %704 = vmatpush1.msra.mxu0 %v51
    %705 = vmatprep.subr.mxu0 0.0
    %706 = vmatpush1.msra.mxu0 %v52
    %707 = vmatprep.subr.mxu0 0.0
    %708 = vmatpush1.msra.mxu0 %v53
    %709 = vmatprep.subr.mxu0 0.0
    %710 = vmatpush1.msra.mxu0 %v54
    %711 = vmatprep.subr.mxu0 0.0
    %712 = vmatpush1.msra.mxu0 0.0
    %713 = vmatprep.subr.mxu0 0.0
    %714 = vmatpush1.msra.mxu0 0.0
    %715 = vmatprep.subr.mxu0 0.0
    %716 = vmatpush1.msra.mxu0 0.0
    %717 = vmatprep.subr.mxu0 0.0
    %718 = vmatpush1.msra.mxu0 0.0
    %719 = vmatprep.subr.mxu0 0.0
    %720 = vmatpush1.msra.mxu0 0.0
    %721 = vmatprep.subr.mxu0 0.0
    %722 = vmatpush1.msra.mxu0 0.0
    %723 = vmatprep.subr.mxu0 0.0
    %724 = vmatpush1.msra.mxu0 0.0
    %725 = vmatprep.subr.mxu0 0.0
    %726 = vmatpush1.msra.mxu0 0.0
    %727 = vmatprep.subr.mxu0 0.0
    %728 = vmatpush1.msra.mxu0 0.0
    %729 = vmatprep.subr.mxu0 0.0
    %730 = vmatpush1.msra.mxu0 0.0
    %731 = vmatprep.subr.mxu0 0.0
    %732 = vmatpush1.msra.mxu0 0.0
    %733 = vmatprep.subr.mxu0 0.0
    %734 = vmatpush1.msra.mxu0 0.0
    %735 = vmatprep.subr.mxu0 0.0
    %736 = vmatpush1.msra.mxu0 0.0
    %737 = vmatprep.subr.mxu0 0.0
    %738 = vmatpush1.msra.mxu0 0.0
    %739 = vmatprep.subr.mxu0 0.0
    %740 = vmatpush1.msra.mxu0 0.0
    %741 = vmatprep.subr.mxu0 0.0
    %742 = vmatpush1.msra.mxu0 0.0
    %743 = vmatprep.subr.mxu0 0.0
    %744 = vmatpush1.msra.mxu0 0.0
    %745 = vmatprep.subr.mxu0 0.0
    %746 = vmatpush1.msra.mxu0 0.0
    %747 = vmatprep.subr.mxu0 0.0
    %748 = vmatpush1.msra.mxu0 0.0
    %749 = vmatprep.subr.mxu0 0.0
    %750 = vmatpush1.msra.mxu0 0.0
    %751 = vmatprep.subr.mxu0 0.0
    %752 = vmatpush1.msra.mxu0 0.0
    %753 = vmatprep.subr.mxu0 0.0
    %754 = vmatpush1.msra.mxu0 0.0
    %755 = vmatprep.subr.mxu0 0.0
    %756 = vmatpush1.msra.mxu0 0.0
    %757 = vmatprep.subr.mxu0 0.0
    %758 = vmatpush1.msra.mxu0 0.0
    %759 = vmatprep.subr.mxu0 0.0
    %760 = vmatpush1.msra.mxu0 0.0
    %761 = vmatprep.subr.mxu0 0.0
    %762 = vmatpush1.msra.mxu0 0.0
    %763 = vmatprep.subr.mxu0 0.0
    %764 = vmatpush1.msra.mxu0 0.0
    %765 = vmatprep.subr.mxu0 0.0
    %766 = vmatpush1.msra.mxu0 0.0
    %767 = vmatprep.mubr.f32.mxu0 0.0
    %768 = vmatmul.mubr.f32.gmra.mrb[0].mxu0 %v701
    %v769 = vpop.f32.mrb[0].mxu0
    %v770 = vadd.f32 0.0, %v769
    %v771 = vpop.f32.mrb[0].mxu0
    %772 = vdwg.mxu0
    %v773 = vadd.f32 %v700, %v770
    %v774 = vxor.u32 %v773, 2147483648
    %v775 = vmul.f32 %v774, 1.442695
    %v776 = vpow.pop %v775
    %v777 = vadd.f32 %v776, 1.0
    %v778 = vrcp.pop %v777
    %v779 = vmul.f32 1.0, %v778
    %v780 = vtanh.pop %v773
    %v781 = vmul.f32 %v779, %v581
    %783 = vrot.lane.b32.xlu0 %v780, 64
    %v784 = vpop.permute.xlu0 %783
    %v786 = vmul.f32 %v779, %v784
    %788 = vrot.lane.b32.xlu0 %v786, 32
    %v789 = vpop.permute.xlu0 %788
    %v791 = vadd.f32 %v781, %v789
    %v792 = vtanh.pop %v791
    %794 = vrot.lane.b32.xlu0 %v792, 64
    %v795 = vpop.permute.xlu0 %794
    %v797 = vmul.f32 %v779, %v795
    %799 = vrot.lane.b32.xlu0 %v797, 32
    %v800 = vpop.permute.xlu0 %799
    %802 = vrot.lane.b32.xlu0 %v692, 64
    %v803 = vpop.permute.xlu0 %802
    %v805 = vsel %vm71, %v800, %v803
    %v807 = vsel %vm175, %v805, 0
    %809 = vmatprep.subr.mxu0 0.0
    %810 = vmatpush1.msra.mxu0 %v55
    %811 = vmatprep.subr.mxu0 0.0
    %812 = vmatpush1.msra.mxu0 %v56
    %813 = vmatprep.subr.mxu0 0.0
    %814 = vmatpush1.msra.mxu0 %v57
    %815 = vmatprep.subr.mxu0 0.0
    %816 = vmatpush1.msra.mxu0 %v58
    %817 = vmatprep.subr.mxu0 0.0
    %818 = vmatpush1.msra.mxu0 %v59
    %819 = vmatprep.subr.mxu0 0.0
    %820 = vmatpush1.msra.mxu0 %v60
    %821 = vmatprep.subr.mxu0 0.0
    %822 = vmatpush1.msra.mxu0 %v61
    %823 = vmatprep.subr.mxu0 0.0
    %824 = vmatpush1.msra.mxu0 %v62
    %825 = vmatprep.subr.mxu0 0.0
    %826 = vmatpush1.msra.mxu0 0.0
    %827 = vmatprep.subr.mxu0 0.0
    %828 = vmatpush1.msra.mxu0 0.0
    %829 = vmatprep.subr.mxu0 0.0
    %830 = vmatpush1.msra.mxu0 0.0
    %831 = vmatprep.subr.mxu0 0.0
    %832 = vmatpush1.msra.mxu0 0.0
    %833 = vmatprep.subr.mxu0 0.0
    %834 = vmatpush1.msra.mxu0 0.0
    %835 = vmatprep.subr.mxu0 0.0
    %836 = vmatpush1.msra.mxu0 0.0
    %837 = vmatprep.subr.mxu0 0.0
    %838 = vmatpush1.msra.mxu0 0.0
    %839 = vmatprep.subr.mxu0 0.0
    %840 = vmatpush1.msra.mxu0 0.0
    %841 = vmatprep.subr.mxu0 0.0
    %842 = vmatpush1.msra.mxu0 0.0
    %843 = vmatprep.subr.mxu0 0.0
    %844 = vmatpush1.msra.mxu0 0.0
    %845 = vmatprep.subr.mxu0 0.0
    %846 = vmatpush1.msra.mxu0 0.0
    %847 = vmatprep.subr.mxu0 0.0
    %848 = vmatpush1.msra.mxu0 0.0
    %849 = vmatprep.subr.mxu0 0.0
    %850 = vmatpush1.msra.mxu0 0.0
    %851 = vmatprep.subr.mxu0 0.0
    %852 = vmatpush1.msra.mxu0 0.0
    %853 = vmatprep.subr.mxu0 0.0
    %854 = vmatpush1.msra.mxu0 0.0
    %855 = vmatprep.subr.mxu0 0.0
    %856 = vmatpush1.msra.mxu0 0.0
    %857 = vmatprep.subr.mxu0 0.0
    %858 = vmatpush1.msra.mxu0 0.0
    %859 = vmatprep.subr.mxu0 0.0
    %860 = vmatpush1.msra.mxu0 0.0
    %861 = vmatprep.subr.mxu0 0.0
    %862 = vmatpush1.msra.mxu0 0.0
    %863 = vmatprep.subr.mxu0 0.0
    %864 = vmatpush1.msra.mxu0 0.0
    %865 = vmatprep.subr.mxu0 0.0
    %866 = vmatpush1.msra.mxu0 0.0
    %867 = vmatprep.subr.mxu0 0.0
    %868 = vmatpush1.msra.mxu0 0.0
    %869 = vmatprep.subr.mxu0 0.0
    %870 = vmatpush1.msra.mxu0 0.0
    %871 = vmatprep.subr.mxu0 0.0
    %872 = vmatpush1.msra.mxu0 0.0
    %873 = vmatprep.mubr.f32.mxu0 0.0
    %874 = vmatmul.mubr.f32.gmra.mrb[0].mxu0 %v807
    %v875 = vpop.f32.mrb[0].mxu0
    %v876 = vadd.f32 %v68, %v875
    %v877 = vpop.f32.mrb[0].mxu0
    %878 = vdwg.mxu0
    %v879 = vxor.u32 %v876, 2147483648
    %v880 = vmul.f32 %v879, 1.442695
    %v881 = vpow.pop %v880
    %v882 = vadd.f32 %v881, 1.0
    %v883 = vrcp.pop %v882
    %v884 = vmul.f32 1.0, %v883
    %v885 = vtanh.pop %v876
    %v886 = vmul.f32 %v884, %v686
    %888 = vrot.lane.b32.xlu0 %v885, 64
    %v889 = vpop.permute.xlu0 %888
    %v891 = vmul.f32 %v884, %v889
    %893 = vrot.lane.b32.xlu0 %v891, 32
    %v894 = vpop.permute.xlu0 %893
    %v896 = vadd.f32 %v886, %v894
    %v897 = vtanh.pop %v896
    %899 = vrot.lane.b32.xlu0 %v897, 64
    %v900 = vpop.permute.xlu0 %899
    %v902 = vmul.f32 %v884, %v900
    %904 = vrot.lane.b32.xlu0 %v902, 32
    %v905 = vpop.permute.xlu0 %904
    %s907 = scalar_lea.vmem [#allocation2], 6
    %908 = vst.msk [vmem:[%s907] sm:$0x3] %vm277, %v905
    %s909 = scalar_lea.vmem [#allocation3], 8
    %v910 = vld [vmem:[%s909] sm:$0x3]
    %v911 = vsel %vm71, %v800, 0
    %913 = vmatprep.subr.mxu0 0.0
    %914 = vmatpush1.msra.mxu0 %v51
    %915 = vmatprep.subr.mxu0 0.0
    %916 = vmatpush1.msra.mxu0 %v52
    %917 = vmatprep.subr.mxu0 0.0
    %918 = vmatpush1.msra.mxu0 %v53
    %919 = vmatprep.subr.mxu0 0.0
    %920 = vmatpush1.msra.mxu0 %v54
    %921 = vmatprep.subr.mxu0 0.0
    %922 = vmatpush1.msra.mxu0 0.0
    %923 = vmatprep.subr.mxu0 0.0
    %924 = vmatpush1.msra.mxu0 0.0
    %925 = vmatprep.subr.mxu0 0.0
    %926 = vmatpush1.msra.mxu0 0.0
    %927 = vmatprep.subr.mxu0 0.0
    %928 = vmatpush1.msra.mxu0 0.0
    %929 = vmatprep.subr.mxu0 0.0
    %930 = vmatpush1.msra.mxu0 0.0
    %931 = vmatprep.subr.mxu0 0.0
    %932 = vmatpush1.msra.mxu0 0.0
    %933 = vmatprep.subr.mxu0 0.0
    %934 = vmatpush1.msra.mxu0 0.0
    %935 = vmatprep.subr.mxu0 0.0
    %936 = vmatpush1.msra.mxu0 0.0
    %937 = vmatprep.subr.mxu0 0.0
    %938 = vmatpush1.msra.mxu0 0.0
    %939 = vmatprep.subr.mxu0 0.0
    %940 = vmatpush1.msra.mxu0 0.0
    %941 = vmatprep.subr.mxu0 0.0
    %942 = vmatpush1.msra.mxu0 0.0
    %943 = vmatprep.subr.mxu0 0.0
    %944 = vmatpush1.msra.mxu0 0.0
    %945 = vmatprep.subr.mxu0 0.0
    %946 = vmatpush1.msra.mxu0 0.0
    %947 = vmatprep.subr.mxu0 0.0
    %948 = vmatpush1.msra.mxu0 0.0
    %949 = vmatprep.subr.mxu0 0.0
    %950 = vmatpush1.msra.mxu0 0.0
    %951 = vmatprep.subr.mxu0 0.0
    %952 = vmatpush1.msra.mxu0 0.0
    %953 = vmatprep.subr.mxu0 0.0
    %954 = vmatpush1.msra.mxu0 0.0
    %955 = vmatprep.subr.mxu0 0.0
    %956 = vmatpush1.msra.mxu0 0.0
    %957 = vmatprep.subr.mxu0 0.0
    %958 = vmatpush1.msra.mxu0 0.0
    %959 = vmatprep.subr.mxu0 0.0
    %960 = vmatpush1.msra.mxu0 0.0
    %961 = vmatprep.subr.mxu0 0.0
    %962 = vmatpush1.msra.mxu0 0.0
    %963 = vmatprep.subr.mxu0 0.0
    %964 = vmatpush1.msra.mxu0 0.0
    %965 = vmatprep.subr.mxu0 0.0
    %966 = vmatpush1.msra.mxu0 0.0
    %967 = vmatprep.subr.mxu0 0.0
    %968 = vmatpush1.msra.mxu0 0.0
    %969 = vmatprep.subr.mxu0 0.0
    %970 = vmatpush1.msra.mxu0 0.0
    %971 = vmatprep.subr.mxu0 0.0
    %972 = vmatpush1.msra.mxu0 0.0
    %973 = vmatprep.subr.mxu0 0.0
    %974 = vmatpush1.msra.mxu0 0.0
    %975 = vmatprep.subr.mxu0 0.0
    %976 = vmatpush1.msra.mxu0 0.0
    %977 = vmatprep.mubr.f32.mxu0 0.0
    %978 = vmatmul.mubr.f32.gmra.mrb[0].mxu0 %v911
    %v979 = vpop.f32.mrb[0].mxu0
    %v980 = vadd.f32 0.0, %v979
    %v981 = vpop.f32.mrb[0].mxu0
    %982 = vdwg.mxu0
    %v983 = vadd.f32 %v910, %v980
    %v984 = vxor.u32 %v983, 2147483648
    %v985 = vmul.f32 %v984, 1.442695
    %v986 = vpow.pop %v985
    %v987 = vadd.f32 %v986, 1.0
    %v988 = vrcp.pop %v987
    %v989 = vmul.f32 1.0, %v988
    %v990 = vtanh.pop %v983
    %v991 = vmul.f32 %v989, %v791
    %993 = vrot.lane.b32.xlu0 %v990, 64
    %v994 = vpop.permute.xlu0 %993
    %v996 = vmul.f32 %v989, %v994
    %998 = vrot.lane.b32.xlu0 %v996, 32
    %v999 = vpop.permute.xlu0 %998
    %v1001 = vadd.f32 %v991, %v999
    %v1002 = vtanh.pop %v1001
    %1004 = vrot.lane.b32.xlu0 %v1002, 64
    %v1005 = vpop.permute.xlu0 %1004
    %v1007 = vmul.f32 %v989, %v1005
    %1009 = vrot.lane.b32.xlu0 %v1007, 32
    %v1010 = vpop.permute.xlu0 %1009
    %1012 = vrot.lane.b32.xlu0 %v902, 64
    %v1013 = vpop.permute.xlu0 %1012
    %v1015 = vsel %vm71, %v1010, %v1013
    %v1017 = vsel %vm175, %v1015, 0
    %1019 = vmatprep.subr.mxu0 0.0
    %1020 = vmatpush1.msra.mxu0 %v55
    %1021 = vmatprep.subr.mxu0 0.0
    %1022 = vmatpush1.msra.mxu0 %v56
    %1023 = vmatprep.subr.mxu0 0.0
    %1024 = vmatpush1.msra.mxu0 %v57
    %1025 = vmatprep.subr.mxu0 0.0
    %1026 = vmatpush1.msra.mxu0 %v58
    %1027 = vmatprep.subr.mxu0 0.0
    %1028 = vmatpush1.msra.mxu0 %v59
    %1029 = vmatprep.subr.mxu0 0.0
    %1030 = vmatpush1.msra.mxu0 %v60
    %1031 = vmatprep.subr.mxu0 0.0
    %1032 = vmatpush1.msra.mxu0 %v61
    %1033 = vmatprep.subr.mxu0 0.0
    %1034 = vmatpush1.msra.mxu0 %v62
    %1035 = vmatprep.subr.mxu0 0.0
    %1036 = vmatpush1.msra.mxu0 0.0
    %1037 = vmatprep.subr.mxu0 0.0
    %1038 = vmatpush1.msra.mxu0 0.0
    %1039 = vmatprep.subr.mxu0 0.0
    %1040 = vmatpush1.msra.mxu0 0.0
    %1041 = vmatprep.subr.mxu0 0.0
    %1042 = vmatpush1.msra.mxu0 0.0
    %1043 = vmatprep.subr.mxu0 0.0
    %1044 = vmatpush1.msra.mxu0 0.0
    %1045 = vmatprep.subr.mxu0 0.0
    %1046 = vmatpush1.msra.mxu0 0.0
    %1047 = vmatprep.subr.mxu0 0.0
    %1048 = vmatpush1.msra.mxu0 0.0
    %1049 = vmatprep.subr.mxu0 0.0
    %1050 = vmatpush1.msra.mxu0 0.0
    %1051 = vmatprep.subr.mxu0 0.0
    %1052 = vmatpush1.msra.mxu0 0.0
    %1053 = vmatprep.subr.mxu0 0.0
    %1054 = vmatpush1.msra.mxu0 0.0
    %1055 = vmatprep.subr.mxu0 0.0
    %1056 = vmatpush1.msra.mxu0 0.0
    %1057 = vmatprep.subr.mxu0 0.0
    %1058 = vmatpush1.msra.mxu0 0.0
    %1059 = vmatprep.subr.mxu0 0.0
    %1060 = vmatpush1.msra.mxu0 0.0
    %1061 = vmatprep.subr.mxu0 0.0
    %1062 = vmatpush1.msra.mxu0 0.0
    %1063 = vmatprep.subr.mxu0 0.0
    %1064 = vmatpush1.msra.mxu0 0.0
    %1065 = vmatprep.subr.mxu0 0.0
    %1066 = vmatpush1.msra.mxu0 0.0
    %1067 = vmatprep.subr.mxu0 0.0
    %1068 = vmatpush1.msra.mxu0 0.0
    %1069 = vmatprep.subr.mxu0 0.0
    %1070 = vmatpush1.msra.mxu0 0.0
    %1071 = vmatprep.subr.mxu0 0.0
    %1072 = vmatpush1.msra.mxu0 0.0
    %1073 = vmatprep.subr.mxu0 0.0
    %1074 = vmatpush1.msra.mxu0 0.0
    %1075 = vmatprep.subr.mxu0 0.0
    %1076 = vmatpush1.msra.mxu0 0.0
    %1077 = vmatprep.subr.mxu0 0.0
    %1078 = vmatpush1.msra.mxu0 0.0
    %1079 = vmatprep.subr.mxu0 0.0
    %1080 = vmatpush1.msra.mxu0 0.0
    %1081 = vmatprep.subr.mxu0 0.0
    %1082 = vmatpush1.msra.mxu0 0.0
    %1083 = vmatprep.mubr.f32.mxu0 0.0
    %1084 = vmatmul.mubr.f32.gmra.mrb[0].mxu0 %v1017
    %v1085 = vpop.f32.mrb[0].mxu0
    %v1086 = vadd.f32 %v68, %v1085
    %v1087 = vpop.f32.mrb[0].mxu0
    %1088 = vdwg.mxu0
    %v1089 = vxor.u32 %v1086, 2147483648
    %v1090 = vmul.f32 %v1089, 1.442695
    %v1091 = vpow.pop %v1090
    %v1092 = vadd.f32 %v1091, 1.0
    %v1093 = vrcp.pop %v1092
    %v1094 = vmul.f32 1.0, %v1093
    %v1095 = vtanh.pop %v1086
    %v1096 = vmul.f32 %v1094, %v896
    %1098 = vrot.lane.b32.xlu0 %v1095, 64
    %v1099 = vpop.permute.xlu0 %1098
    %v1101 = vmul.f32 %v1094, %v1099
    %1103 = vrot.lane.b32.xlu0 %v1101, 32
    %v1104 = vpop.permute.xlu0 %1103
    %v1106 = vadd.f32 %v1096, %v1104
    %v1107 = vtanh.pop %v1106
    %1109 = vrot.lane.b32.xlu0 %v1107, 64
    %v1110 = vpop.permute.xlu0 %1109
    %v1112 = vmul.f32 %v1094, %v1110
    %1114 = vrot.lane.b32.xlu0 %v1112, 32
    %v1115 = vpop.permute.xlu0 %1114
    %s1117 = scalar_lea.vmem [#allocation2], 8
    %1118 = vst.msk [vmem:[%s1117] sm:$0x3] %vm277, %v1115
    %s1119 = scalar_lea.vmem [#allocation3], 10
    %v1120 = vld [vmem:[%s1119] sm:$0x3]
    %v1121 = vsel %vm71, %v1010, 0
    %1123 = vmatprep.subr.mxu0 0.0
    %1124 = vmatpush1.msra.mxu0 %v51
    %1125 = vmatprep.subr.mxu0 0.0
    %1126 = vmatpush1.msra.mxu0 %v52
    %1127 = vmatprep.subr.mxu0 0.0
    %1128 = vmatpush1.msra.mxu0 %v53
    %1129 = vmatprep.subr.mxu0 0.0
    %1130 = vmatpush1.msra.mxu0 %v54
    %1131 = vmatprep.subr.mxu0 0.0
    %1132 = vmatpush1.msra.mxu0 0.0
    %1133 = vmatprep.subr.mxu0 0.0
    %1134 = vmatpush1.msra.mxu0 0.0
    %1135 = vmatprep.subr.mxu0 0.0
    %1136 = vmatpush1.msra.mxu0 0.0
    %1137 = vmatprep.subr.mxu0 0.0
    %1138 = vmatpush1.msra.mxu0 0.0
    %1139 = vmatprep.subr.mxu0 0.0
    %1140 = vmatpush1.msra.mxu0 0.0
    %1141 = vmatprep.subr.mxu0 0.0
    %1142 = vmatpush1.msra.mxu0 0.0
    %1143 = vmatprep.subr.mxu0 0.0
    %1144 = vmatpush1.msra.mxu0 0.0
    %1145 = vmatprep.subr.mxu0 0.0
    %1146 = vmatpush1.msra.mxu0 0.0
    %1147 = vmatprep.subr.mxu0 0.0
    %1148 = vmatpush1.msra.mxu0 0.0
    %1149 = vmatprep.subr.mxu0 0.0
    %1150 = vmatpush1.msra.mxu0 0.0
    %1151 = vmatprep.subr.mxu0 0.0
    %1152 = vmatpush1.msra.mxu0 0.0
    %1153 = vmatprep.subr.mxu0 0.0
    %1154 = vmatpush1.msra.mxu0 0.0
    %1155 = vmatprep.subr.mxu0 0.0
    %1156 = vmatpush1.msra.mxu0 0.0
    %1157 = vmatprep.subr.mxu0 0.0
    %1158 = vmatpush1.msra.mxu0 0.0
    %1159 = vmatprep.subr.mxu0 0.0
    %1160 = vmatpush1.msra.mxu0 0.0
    %1161 = vmatprep.subr.mxu0 0.0
    %1162 = vmatpush1.msra.mxu0 0.0
    %1163 = vmatprep.subr.mxu0 0.0
    %1164 = vmatpush1.msra.mxu0 0.0
    %1165 = vmatprep.subr.mxu0 0.0
    %1166 = vmatpush1.msra.mxu0 0.0
    %1167 = vmatprep.subr.mxu0 0.0
    %1168 = vmatpush1.msra.mxu0 0.0
    %1169 = vmatprep.subr.mxu0 0.0
    %1170 = vmatpush1.msra.mxu0 0.0
    %1171 = vmatprep.subr.mxu0 0.0
    %1172 = vmatpush1.msra.mxu0 0.0
    %1173 = vmatprep.subr.mxu0 0.0
    %1174 = vmatpush1.msra.mxu0 0.0
    %1175 = vmatprep.subr.mxu0 0.0
    %1176 = vmatpush1.msra.mxu0 0.0
    %1177 = vmatprep.subr.mxu0 0.0
    %1178 = vmatpush1.msra.mxu0 0.0
    %1179 = vmatprep.subr.mxu0 0.0
    %1180 = vmatpush1.msra.mxu0 0.0
    %1181 = vmatprep.subr.mxu0 0.0
    %1182 = vmatpush1.msra.mxu0 0.0
    %1183 = vmatprep.subr.mxu0 0.0
    %1184 = vmatpush1.msra.mxu0 0.0
    %1185 = vmatprep.subr.mxu0 0.0
    %1186 = vmatpush1.msra.mxu0 0.0
    %1187 = vmatprep.mubr.f32.mxu0 0.0
    %1188 = vmatmul.mubr.f32.gmra.mrb[0].mxu0 %v1121
    %v1189 = vpop.f32.mrb[0].mxu0
    %v1190 = vadd.f32 0.0, %v1189
    %v1191 = vpop.f32.mrb[0].mxu0
    %1192 = vdwg.mxu0
    %v1193 = vadd.f32 %v1120, %v1190
    %v1194 = vxor.u32 %v1193, 2147483648
    %v1195 = vmul.f32 %v1194, 1.442695
    %v1196 = vpow.pop %v1195
    %v1197 = vadd.f32 %v1196, 1.0
    %v1198 = vrcp.pop %v1197
    %v1199 = vmul.f32 1.0, %v1198
    %v1200 = vtanh.pop %v1193
    %v1201 = vmul.f32 %v1199, %v1001
    %1203 = vrot.lane.b32.xlu0 %v1200, 64
    %v1204 = vpop.permute.xlu0 %1203
    %v1206 = vmul.f32 %v1199, %v1204
    %1208 = vrot.lane.b32.xlu0 %v1206, 32
    %v1209 = vpop.permute.xlu0 %1208
    %v1211 = vadd.f32 %v1201, %v1209
    %v1212 = vtanh.pop %v1211
    %1214 = vrot.lane.b32.xlu0 %v1212, 64
    %v1215 = vpop.permute.xlu0 %1214
    %v1217 = vmul.f32 %v1199, %v1215
    %1219 = vrot.lane.b32.xlu0 %v1217, 32
    %v1220 = vpop.permute.xlu0 %1219
    %1222 = vrot.lane.b32.xlu0 %v1112, 64
    %v1223 = vpop.permute.xlu0 %1222
    %v1225 = vsel %vm71, %v1220, %v1223
    %v1227 = vsel %vm175, %v1225, 0
    %1229 = vmatprep.subr.mxu0 0.0
    %1230 = vmatpush1.msra.mxu0 %v55
    %1231 = vmatprep.subr.mxu0 0.0
    %1232 = vmatpush1.msra.mxu0 %v56
    %1233 = vmatprep.subr.mxu0 0.0
    %1234 = vmatpush1.msra.mxu0 %v57
    %1235 = vmatprep.subr.mxu0 0.0
    %1236 = vmatpush1.msra.mxu0 %v58
    %1237 = vmatprep.subr.mxu0 0.0
    %1238 = vmatpush1.msra.mxu0 %v59
    %1239 = vmatprep.subr.mxu0 0.0
    %1240 = vmatpush1.msra.mxu0 %v60
    %1241 = vmatprep.subr.mxu0 0.0
    %1242 = vmatpush1.msra.mxu0 %v61
    %1243 = vmatprep.subr.mxu0 0.0
    %1244 = vmatpush1.msra.mxu0 %v62
    %1245 = vmatprep.subr.mxu0 0.0
    %1246 = vmatpush1.msra.mxu0 0.0
    %1247 = vmatprep.subr.mxu0 0.0
    %1248 = vmatpush1.msra.mxu0 0.0
    %1249 = vmatprep.subr.mxu0 0.0
    %1250 = vmatpush1.msra.mxu0 0.0
    %1251 = vmatprep.subr.mxu0 0.0
    %1252 = vmatpush1.msra.mxu0 0.0
    %1253 = vmatprep.subr.mxu0 0.0
    %1254 = vmatpush1.msra.mxu0 0.0
    %1255 = vmatprep.subr.mxu0 0.0
    %1256 = vmatpush1.msra.mxu0 0.0
    %1257 = vmatprep.subr.mxu0 0.0
    %1258 = vmatpush1.msra.mxu0 0.0
    %1259 = vmatprep.subr.mxu0 0.0
    %1260 = vmatpush1.msra.mxu0 0.0
    %1261 = vmatprep.subr.mxu0 0.0
    %1262 = vmatpush1.msra.mxu0 0.0
    %1263 = vmatprep.subr.mxu0 0.0
    %1264 = vmatpush1.msra.mxu0 0.0
    %1265 = vmatprep.subr.mxu0 0.0
    %1266 = vmatpush1.msra.mxu0 0.0
    %1267 = vmatprep.subr.mxu0 0.0
    %1268 = vmatpush1.msra.mxu0 0.0
    %1269 = vmatprep.subr.mxu0 0.0
    %1270 = vmatpush1.msra.mxu0 0.0
    %1271 = vmatprep.subr.mxu0 0.0
    %1272 = vmatpush1.msra.mxu0 0.0
    %1273 = vmatprep.subr.mxu0 0.0
    %1274 = vmatpush1.msra.mxu0 0.0
    %1275 = vmatprep.subr.mxu0 0.0
    %1276 = vmatpush1.msra.mxu0 0.0
    %1277 = vmatprep.subr.mxu0 0.0
    %1278 = vmatpush1.msra.mxu0 0.0
    %1279 = vmatprep.subr.mxu0 0.0
    %1280 = vmatpush1.msra.mxu0 0.0
    %1281 = vmatprep.subr.mxu0 0.0
    %1282 = vmatpush1.msra.mxu0 0.0
    %1283 = vmatprep.subr.mxu0 0.0
    %1284 = vmatpush1.msra.mxu0 0.0
    %1285 = vmatprep.subr.mxu0 0.0
    %1286 = vmatpush1.msra.mxu0 0.0
    %1287 = vmatprep.subr.mxu0 0.0
    %1288 = vmatpush1.msra.mxu0 0.0
    %1289 = vmatprep.subr.mxu0 0.0
    %1290 = vmatpush1.msra.mxu0 0.0
    %1291 = vmatprep.subr.mxu0 0.0
    %1292 = vmatpush1.msra.mxu0 0.0
    %1293 = vmatprep.mubr.f32.mxu0 0.0
    %1294 = vmatmul.mubr.f32.gmra.mrb[0].mxu0 %v1227
    %v1295 = vpop.f32.mrb[0].mxu0
    %v1296 = vadd.f32 %v68, %v1295
    %v1297 = vpop.f32.mrb[0].mxu0
    %1298 = vdwg.mxu0
    %v1299 = vxor.u32 %v1296, 2147483648
    %v1300 = vmul.f32 %v1299, 1.442695
    %v1301 = vpow.pop %v1300
    %v1302 = vadd.f32 %v1301, 1.0
    %v1303 = vrcp.pop %v1302
    %v1304 = vmul.f32 1.0, %v1303
    %v1305 = vtanh.pop %v1296
    %v1306 = vmul.f32 %v1304, %v1106
    %1308 = vrot.lane.b32.xlu0 %v1305, 64
    %v1309 = vpop.permute.xlu0 %1308
    %v1311 = vmul.f32 %v1304, %v1309
    %1313 = vrot.lane.b32.xlu0 %v1311, 32
    %v1314 = vpop.permute.xlu0 %1313
    %v1316 = vadd.f32 %v1306, %v1314
    %v1317 = vtanh.pop %v1316
    %1319 = vrot.lane.b32.xlu0 %v1317, 64
    %v1320 = vpop.permute.xlu0 %1319
    %v1322 = vmul.f32 %v1304, %v1320
    %1324 = vrot.lane.b32.xlu0 %v1322, 32
    %v1325 = vpop.permute.xlu0 %1324
    %s1327 = scalar_lea.vmem [#allocation2], 10
    %1328 = vst.msk [vmem:[%s1327] sm:$0x3] %vm277, %v1325
    %s1329 = scalar_lea.vmem [#allocation3], 12
    %v1330 = vld [vmem:[%s1329] sm:$0x3]
    %v1331 = vsel %vm71, %v1220, 0
    %1333 = vmatprep.subr.mxu0 0.0
    %1334 = vmatpush1.msra.mxu0 %v51
    %1335 = vmatprep.subr.mxu0 0.0
    %1336 = vmatpush1.msra.mxu0 %v52
    %1337 = vmatprep.subr.mxu0 0.0
    %1338 = vmatpush1.msra.mxu0 %v53
    %1339 = vmatprep.subr.mxu0 0.0
    %1340 = vmatpush1.msra.mxu0 %v54
    %1341 = vmatprep.subr.mxu0 0.0
    %1342 = vmatpush1.msra.mxu0 0.0
    %1343 = vmatprep.subr.mxu0 0.0
    %1344 = vmatpush1.msra.mxu0 0.0
    %1345 = vmatprep.subr.mxu0 0.0
    %1346 = vmatpush1.msra.mxu0 0.0
    %1347 = vmatprep.subr.mxu0 0.0
    %1348 = vmatpush1.msra.mxu0 0.0
    %1349 = vmatprep.subr.mxu0 0.0
    %1350 = vmatpush1.msra.mxu0 0.0
    %1351 = vmatprep.subr.mxu0 0.0
    %1352 = vmatpush1.msra.mxu0 0.0
    %1353 = vmatprep.subr.mxu0 0.0
    %1354 = vmatpush1.msra.mxu0 0.0
    %1355 = vmatprep.subr.mxu0 0.0
    %1356 = vmatpush1.msra.mxu0 0.0
    %1357 = vmatprep.subr.mxu0 0.0
    %1358 = vmatpush1.msra.mxu0 0.0
    %1359 = vmatprep.subr.mxu0 0.0
    %1360 = vmatpush1.msra.mxu0 0.0
    %1361 = vmatprep.subr.mxu0 0.0
    %1362 = vmatpush1.msra.mxu0 0.0
    %1363 = vmatprep.subr.mxu0 0.0
    %1364 = vmatpush1.msra.mxu0 0.0
    %1365 = vmatprep.subr.mxu0 0.0
    %1366 = vmatpush1.msra.mxu0 0.0
    %1367 = vmatprep.subr.mxu0 0.0
    %1368 = vmatpush1.msra.mxu0 0.0
    %1369 = vmatprep.subr.mxu0 0.0
    %1370 = vmatpush1.msra.mxu0 0.0
    %1371 = vmatprep.subr.mxu0 0.0
    %1372 = vmatpush1.msra.mxu0 0.0
    %1373 = vmatprep.subr.mxu0 0.0
    %1374 = vmatpush1.msra.mxu0 0.0
    %1375 = vmatprep.subr.mxu0 0.0
    %1376 = vmatpush1.msra.mxu0 0.0
    %1377 = vmatprep.subr.mxu0 0.0
    %1378 = vmatpush1.msra.mxu0 0.0
    %1379 = vmatprep.subr.mxu0 0.0
    %1380 = vmatpush1.msra.mxu0 0.0
    %1381 = vmatprep.subr.mxu0 0.0
    %1382 = vmatpush1.msra.mxu0 0.0
    %1383 = vmatprep.subr.mxu0 0.0
    %1384 = vmatpush1.msra.mxu0 0.0
    %1385 = vmatprep.subr.mxu0 0.0
    %1386 = vmatpush1.msra.mxu0 0.0
    %1387 = vmatprep.subr.mxu0 0.0
    %1388 = vmatpush1.msra.mxu0 0.0
    %1389 = vmatprep.subr.mxu0 0.0
    %1390 = vmatpush1.msra.mxu0 0.0
    %1391 = vmatprep.subr.mxu0 0.0
    %1392 = vmatpush1.msra.mxu0 0.0
    %1393 = vmatprep.subr.mxu0 0.0
    %1394 = vmatpush1.msra.mxu0 0.0
    %1395 = vmatprep.subr.mxu0 0.0
    %1396 = vmatpush1.msra.mxu0 0.0
    %1397 = vmatprep.mubr.f32.mxu0 0.0
    %1398 = vmatmul.mubr.f32.gmra.mrb[0].mxu0 %v1331
    %v1399 = vpop.f32.mrb[0].mxu0
    %v1400 = vadd.f32 0.0, %v1399
    %v1401 = vpop.f32.mrb[0].mxu0
    %1402 = vdwg.mxu0
    %v1403 = vadd.f32 %v1330, %v1400
    %v1404 = vxor.u32 %v1403, 2147483648
    %v1405 = vmul.f32 %v1404, 1.442695
    %v1406 = vpow.pop %v1405
    %v1407 = vadd.f32 %v1406, 1.0
    %v1408 = vrcp.pop %v1407
    %v1409 = vmul.f32 1.0, %v1408
    %v1410 = vtanh.pop %v1403
    %v1411 = vmul.f32 %v1409, %v1211
    %1413 = vrot.lane.b32.xlu0 %v1410, 64
    %v1414 = vpop.permute.xlu0 %1413
    %v1416 = vmul.f32 %v1409, %v1414
    %1418 = vrot.lane.b32.xlu0 %v1416, 32
    %v1419 = vpop.permute.xlu0 %1418
    %v1421 = vadd.f32 %v1411, %v1419
    %v1422 = vtanh.pop %v1421
    %1424 = vrot.lane.b32.xlu0 %v1422, 64
    %v1425 = vpop.permute.xlu0 %1424
    %v1427 = vmul.f32 %v1409, %v1425
    %1429 = vrot.lane.b32.xlu0 %v1427, 32
    %v1430 = vpop.permute.xlu0 %1429
    %1432 = vrot.lane.b32.xlu0 %v1322, 64
    %v1433 = vpop.permute.xlu0 %1432
    %v1435 = vsel %vm71, %v1430, %v1433
    %v1437 = vsel %vm175, %v1435, 0
    %1439 = vmatprep.subr.mxu0 0.0
    %1440 = vmatpush1.msra.mxu0 %v55
    %1441 = vmatprep.subr.mxu0 0.0
    %1442 = vmatpush1.msra.mxu0 %v56
    %1443 = vmatprep.subr.mxu0 0.0
    %1444 = vmatpush1.msra.mxu0 %v57
    %1445 = vmatprep.subr.mxu0 0.0
    %1446 = vmatpush1.msra.mxu0 %v58
    %1447 = vmatprep.subr.mxu0 0.0
    %1448 = vmatpush1.msra.mxu0 %v59
    %1449 = vmatprep.subr.mxu0 0.0
    %1450 = vmatpush1.msra.mxu0 %v60
    %1451 = vmatprep.subr.mxu0 0.0
    %1452 = vmatpush1.msra.mxu0 %v61
    %1453 = vmatprep.subr.mxu0 0.0
    %1454 = vmatpush1.msra.mxu0 %v62
    %1455 = vmatprep.subr.mxu0 0.0
    %1456 = vmatpush1.msra.mxu0 0.0
    %1457 = vmatprep.subr.mxu0 0.0
    %1458 = vmatpush1.msra.mxu0 0.0
    %1459 = vmatprep.subr.mxu0 0.0
    %1460 = vmatpush1.msra.mxu0 0.0
    %1461 = vmatprep.subr.mxu0 0.0
    %1462 = vmatpush1.msra.mxu0 0.0
    %1463 = vmatprep.subr.mxu0 0.0
    %1464 = vmatpush1.msra.mxu0 0.0
    %1465 = vmatprep.subr.mxu0 0.0
    %1466 = vmatpush1.msra.mxu0 0.0
    %1467 = vmatprep.subr.mxu0 0.0
    %1468 = vmatpush1.msra.mxu0 0.0
    %1469 = vmatprep.subr.mxu0 0.0
    %1470 = vmatpush1.msra.mxu0 0.0
    %1471 = vmatprep.subr.mxu0 0.0
    %1472 = vmatpush1.msra.mxu0 0.0
    %1473 = vmatprep.subr.mxu0 0.0
    %1474 = vmatpush1.msra.mxu0 0.0
    %1475 = vmatprep.subr.mxu0 0.0
    %1476 = vmatpush1.msra.mxu0 0.0
    %1477 = vmatprep.subr.mxu0 0.0
    %1478 = vmatpush1.msra.mxu0 0.0
    %1479 = vmatprep.subr.mxu0 0.0
    %1480 = vmatpush1.msra.mxu0 0.0
    %1481 = vmatprep.subr.mxu0 0.0
    %1482 = vmatpush1.msra.mxu0 0.0
    %1483 = vmatprep.subr.mxu0 0.0
    %1484 = vmatpush1.msra.mxu0 0.0
    %1485 = vmatprep.subr.mxu0 0.0
    %1486 = vmatpush1.msra.mxu0 0.0
    %1487 = vmatprep.subr.mxu0 0.0
    %1488 = vmatpush1.msra.mxu0 0.0
    %1489 = vmatprep.subr.mxu0 0.0
    %1490 = vmatpush1.msra.mxu0 0.0
    %1491 = vmatprep.subr.mxu0 0.0
    %1492 = vmatpush1.msra.mxu0 0.0
    %1493 = vmatprep.subr.mxu0 0.0
    %1494 = vmatpush1.msra.mxu0 0.0
    %1495 = vmatprep.subr.mxu0 0.0
    %1496 = vmatpush1.msra.mxu0 0.0
    %1497 = vmatprep.subr.mxu0 0.0
    %1498 = vmatpush1.msra.mxu0 0.0
    %1499 = vmatprep.subr.mxu0 0.0
    %1500 = vmatpush1.msra.mxu0 0.0
    %1501 = vmatprep.subr.mxu0 0.0
    %1502 = vmatpush1.msra.mxu0 0.0
    %1503 = vmatprep.mubr.f32.mxu0 0.0
    %1504 = vmatmul.mubr.f32.gmra.mrb[0].mxu0 %v1437
    %v1505 = vpop.f32.mrb[0].mxu0
    %v1506 = vadd.f32 %v68, %v1505
    %v1507 = vpop.f32.mrb[0].mxu0
    %1508 = vdwg.mxu0
    %v1509 = vxor.u32 %v1506, 2147483648
    %v1510 = vmul.f32 %v1509, 1.442695
    %v1511 = vpow.pop %v1510
    %v1512 = vadd.f32 %v1511, 1.0
    %v1513 = vrcp.pop %v1512
    %v1514 = vmul.f32 1.0, %v1513
    %v1515 = vtanh.pop %v1506
    %v1516 = vmul.f32 %v1514, %v1316
    %1518 = vrot.lane.b32.xlu0 %v1515, 64
    %v1519 = vpop.permute.xlu0 %1518
    %v1521 = vmul.f32 %v1514, %v1519
    %1523 = vrot.lane.b32.xlu0 %v1521, 32
    %v1524 = vpop.permute.xlu0 %1523
    %v1526 = vadd.f32 %v1516, %v1524
    %v1527 = vtanh.pop %v1526
    %1529 = vrot.lane.b32.xlu0 %v1527, 64
    %v1530 = vpop.permute.xlu0 %1529
    %v1532 = vmul.f32 %v1514, %v1530
    %1534 = vrot.lane.b32.xlu0 %v1532, 32
    %v1535 = vpop.permute.xlu0 %1534
    %s1537 = scalar_lea.vmem [#allocation2], 12
    %1538 = vst.msk [vmem:[%s1537] sm:$0x3] %vm277, %v1535
    %s1539 = scalar_lea.vmem [#allocation3], 14
    %v1540 = vld [vmem:[%s1539] sm:$0x3]
    %v1541 = vsel %vm71, %v1430, 0
    %1543 = vmatprep.subr.mxu0 0.0
    %1544 = vmatpush1.msra.mxu0 %v51
    %1545 = vmatprep.subr.mxu0 0.0
    %1546 = vmatpush1.msra.mxu0 %v52
    %1547 = vmatprep.subr.mxu0 0.0
    %1548 = vmatpush1.msra.mxu0 %v53
    %1549 = vmatprep.subr.mxu0 0.0
    %1550 = vmatpush1.msra.mxu0 %v54
    %1551 = vmatprep.subr.mxu0 0.0
    %1552 = vmatpush1.msra.mxu0 0.0
    %1553 = vmatprep.subr.mxu0 0.0
    %1554 = vmatpush1.msra.mxu0 0.0
    %1555 = vmatprep.subr.mxu0 0.0
    %1556 = vmatpush1.msra.mxu0 0.0
    %1557 = vmatprep.subr.mxu0 0.0
    %1558 = vmatpush1.msra.mxu0 0.0
    %1559 = vmatprep.subr.mxu0 0.0
    %1560 = vmatpush1.msra.mxu0 0.0
    %1561 = vmatprep.subr.mxu0 0.0
    %1562 = vmatpush1.msra.mxu0 0.0
    %1563 = vmatprep.subr.mxu0 0.0
    %1564 = vmatpush1.msra.mxu0 0.0
    %1565 = vmatprep.subr.mxu0 0.0
    %1566 = vmatpush1.msra.mxu0 0.0
    %1567 = vmatprep.subr.mxu0 0.0
    %1568 = vmatpush1.msra.mxu0 0.0
    %1569 = vmatprep.subr.mxu0 0.0
    %1570 = vmatpush1.msra.mxu0 0.0
    %1571 = vmatprep.subr.mxu0 0.0
    %1572 = vmatpush1.msra.mxu0 0.0
    %1573 = vmatprep.subr.mxu0 0.0
    %1574 = vmatpush1.msra.mxu0 0.0
    %1575 = vmatprep.subr.mxu0 0.0
    %1576 = vmatpush1.msra.mxu0 0.0
    %1577 = vmatprep.subr.mxu0 0.0
    %1578 = vmatpush1.msra.mxu0 0.0
    %1579 = vmatprep.subr.mxu0 0.0
    %1580 = vmatpush1.msra.mxu0 0.0
    %1581 = vmatprep.subr.mxu0 0.0
    %1582 = vmatpush1.msra.mxu0 0.0
    %1583 = vmatprep.subr.mxu0 0.0
    %1584 = vmatpush1.msra.mxu0 0.0
    %1585 = vmatprep.subr.mxu0 0.0
    %1586 = vmatpush1.msra.mxu0 0.0
    %1587 = vmatprep.subr.mxu0 0.0
    %1588 = vmatpush1.msra.mxu0 0.0
    %1589 = vmatprep.subr.mxu0 0.0
    %1590 = vmatpush1.msra.mxu0 0.0
    %1591 = vmatprep.subr.mxu0 0.0
    %1592 = vmatpush1.msra.mxu0 0.0
    %1593 = vmatprep.subr.mxu0 0.0
    %1594 = vmatpush1.msra.mxu0 0.0
    %1595 = vmatprep.subr.mxu0 0.0
    %1596 = vmatpush1.msra.mxu0 0.0
    %1597 = vmatprep.subr.mxu0 0.0
    %1598 = vmatpush1.msra.mxu0 0.0
    %1599 = vmatprep.subr.mxu0 0.0
    %1600 = vmatpush1.msra.mxu0 0.0
    %1601 = vmatprep.subr.mxu0 0.0
    %1602 = vmatpush1.msra.mxu0 0.0
    %1603 = vmatprep.subr.mxu0 0.0
    %1604 = vmatpush1.msra.mxu0 0.0
    %1605 = vmatprep.subr.mxu0 0.0
    %1606 = vmatpush1.msra.mxu0 0.0
    %1607 = vmatprep.mubr.f32.mxu0 0.0
    %1608 = vmatmul.mubr.f32.gmra.mrb[0].mxu0 %v1541
    %v1609 = vpop.f32.mrb[0].mxu0
    %v1610 = vadd.f32 0.0, %v1609
    %v1611 = vpop.f32.mrb[0].mxu0
    %1612 = vdwg.mxu0
    %v1613 = vadd.f32 %v1540, %v1610
    %v1614 = vxor.u32 %v1613, 2147483648
    %v1615 = vmul.f32 %v1614, 1.442695
    %v1616 = vpow.pop %v1615
    %v1617 = vadd.f32 %v1616, 1.0
    %v1618 = vrcp.pop %v1617
    %v1619 = vmul.f32 1.0, %v1618
    %v1620 = vtanh.pop %v1613
    %v1621 = vmul.f32 %v1619, %v1421
    %1623 = vrot.lane.b32.xlu0 %v1620, 64
    %v1624 = vpop.permute.xlu0 %1623
    %v1626 = vmul.f32 %v1619, %v1624
    %1628 = vrot.lane.b32.xlu0 %v1626, 32
    %v1629 = vpop.permute.xlu0 %1628
    %v1631 = vadd.f32 %v1621, %v1629
    %v1632 = vtanh.pop %v1631
    %1634 = vrot.lane.b32.xlu0 %v1632, 64
    %v1635 = vpop.permute.xlu0 %1634
    %v1637 = vmul.f32 %v1619, %v1635
    %1639 = vrot.lane.b32.xlu0 %v1637, 32
    %v1640 = vpop.permute.xlu0 %1639
    %1642 = vrot.lane.b32.xlu0 %v1532, 64
    %v1643 = vpop.permute.xlu0 %1642
    %v1645 = vsel %vm71, %v1640, %v1643
    %v1647 = vsel %vm175, %v1645, 0
    %1649 = vmatprep.subr.mxu0 0.0
    %1650 = vmatpush1.msra.mxu0 %v55
    %1651 = vmatprep.subr.mxu0 0.0
    %1652 = vmatpush1.msra.mxu0 %v56
    %1653 = vmatprep.subr.mxu0 0.0
    %1654 = vmatpush1.msra.mxu0 %v57
    %1655 = vmatprep.subr.mxu0 0.0
    %1656 = vmatpush1.msra.mxu0 %v58
    %1657 = vmatprep.subr.mxu0 0.0
    %1658 = vmatpush1.msra.mxu0 %v59
    %1659 = vmatprep.subr.mxu0 0.0
    %1660 = vmatpush1.msra.mxu0 %v60
    %1661 = vmatprep.subr.mxu0 0.0
    %1662 = vmatpush1.msra.mxu0 %v61
    %1663 = vmatprep.subr.mxu0 0.0
    %1664 = vmatpush1.msra.mxu0 %v62
    %1665 = vmatprep.subr.mxu0 0.0
    %1666 = vmatpush1.msra.mxu0 0.0
    %1667 = vmatprep.subr.mxu0 0.0
    %1668 = vmatpush1.msra.mxu0 0.0
    %1669 = vmatprep.subr.mxu0 0.0
    %1670 = vmatpush1.msra.mxu0 0.0
    %1671 = vmatprep.subr.mxu0 0.0
    %1672 = vmatpush1.msra.mxu0 0.0
    %1673 = vmatprep.subr.mxu0 0.0
    %1674 = vmatpush1.msra.mxu0 0.0
    %1675 = vmatprep.subr.mxu0 0.0
    %1676 = vmatpush1.msra.mxu0 0.0
    %1677 = vmatprep.subr.mxu0 0.0
    %1678 = vmatpush1.msra.mxu0 0.0
    %1679 = vmatprep.subr.mxu0 0.0
    %1680 = vmatpush1.msra.mxu0 0.0
    %1681 = vmatprep.subr.mxu0 0.0
    %1682 = vmatpush1.msra.mxu0 0.0
    %1683 = vmatprep.subr.mxu0 0.0
    %1684 = vmatpush1.msra.mxu0 0.0
    %1685 = vmatprep.subr.mxu0 0.0
    %1686 = vmatpush1.msra.mxu0 0.0
    %1687 = vmatprep.subr.mxu0 0.0
    %1688 = vmatpush1.msra.mxu0 0.0
    %1689 = vmatprep.subr.mxu0 0.0
    %1690 = vmatpush1.msra.mxu0 0.0
    %1691 = vmatprep.subr.mxu0 0.0
    %1692 = vmatpush1.msra.mxu0 0.0
    %1693 = vmatprep.subr.mxu0 0.0
    %1694 = vmatpush1.msra.mxu0 0.0
    %1695 = vmatprep.subr.mxu0 0.0
    %1696 = vmatpush1.msra.mxu0 0.0
    %1697 = vmatprep.subr.mxu0 0.0
    %1698 = vmatpush1.msra.mxu0 0.0
    %1699 = vmatprep.subr.mxu0 0.0
    %1700 = vmatpush1.msra.mxu0 0.0
    %1701 = vmatprep.subr.mxu0 0.0
    %1702 = vmatpush1.msra.mxu0 0.0
    %1703 = vmatprep.subr.mxu0 0.0
    %1704 = vmatpush1.msra.mxu0 0.0
    %1705 = vmatprep.subr.mxu0 0.0
    %1706 = vmatpush1.msra.mxu0 0.0
    %1707 = vmatprep.subr.mxu0 0.0
    %1708 = vmatpush1.msra.mxu0 0.0
    %1709 = vmatprep.subr.mxu0 0.0
    %1710 = vmatpush1.msra.mxu0 0.0
    %1711 = vmatprep.subr.mxu0 0.0
    %1712 = vmatpush1.msra.mxu0 0.0
    %1713 = vmatprep.mubr.f32.mxu0 0.0
    %1714 = vmatmul.mubr.f32.gmra.mrb[0].mxu0 %v1647
    %v1715 = vpop.f32.mrb[0].mxu0
    %v1716 = vadd.f32 %v68, %v1715
    %v1717 = vpop.f32.mrb[0].mxu0
    %1718 = vdwg.mxu0
    %v1719 = vxor.u32 %v1716, 2147483648
    %v1720 = vmul.f32 %v1719, 1.442695
    %v1721 = vpow.pop %v1720
    %v1722 = vadd.f32 %v1721, 1.0
    %v1723 = vrcp.pop %v1722
    %v1724 = vmul.f32 1.0, %v1723
    %v1725 = vtanh.pop %v1716
    %v1726 = vmul.f32 %v1724, %v1526
    %1728 = vrot.lane.b32.xlu0 %v1725, 64
    %v1729 = vpop.permute.xlu0 %1728
    %v1731 = vmul.f32 %v1724, %v1729
    %1733 = vrot.lane.b32.xlu0 %v1731, 32
    %v1734 = vpop.permute.xlu0 %1733
    %v1736 = vadd.f32 %v1726, %v1734
    %v1737 = vtanh.pop %v1736
    %1739 = vrot.lane.b32.xlu0 %v1737, 64
    %v1740 = vpop.permute.xlu0 %1739
    %v1742 = vmul.f32 %v1724, %v1740
    %1744 = vrot.lane.b32.xlu0 %v1742, 32
    %v1745 = vpop.permute.xlu0 %1744
    %s1747 = scalar_lea.vmem [#allocation2], 14
    %1748 = vst.msk [vmem:[%s1747] sm:$0x3] %vm277, %v1745
    %v1749 = vld [vmem:[#allocation2] sm:$0x3]
    %v1750 = vld [vmem:[#allocation2 + $0x2] sm:$0x3]
    %v1751 = vld [vmem:[#allocation2 + $0x4] sm:$0x3]
    %v1752 = vld [vmem:[#allocation2 + $0x6] sm:$0x3]
    %v1753 = vld [vmem:[#allocation2 + $0x8] sm:$0x3]
    %v1754 = vld [vmem:[#allocation2 + $0xa] sm:$0x3]
    %v1755 = vld [vmem:[#allocation2 + $0xc] sm:$0x3]
    %v1756 = vld [vmem:[#allocation2 + $0xe] sm:$0x3]
    %v1757 = vld [vmem:[%s4] sm:$0xff]
    %v1758 = vld [vmem:[%s4 + $0x8] sm:$0xff]
    %v1759 = vld [vmem:[%s4 + $0x10] sm:$0xff]
    %v1760 = vld [vmem:[%s4 + $0x18] sm:$0xff]
    %v1761 = vld [vmem:[%s5] sm:$0x1]
    %v1763 = vlaneseq
    %v1764 = vshrl.u32 %v1763, 7
    %v1765 = vsub.s32 0, %v1764
    %v1766 = vrot.slane %v1761, %v1765
    %v1776 = vcombine.low %v1749, %v1750
    %v1777 = vcombine.low %v1751, %v1752
    %v1779 = vunpack.c.l.s4 1983009808
    %v1780 = vunpack.c.0.s8 %v1779
    %v1781 = vlaneseq
    %v1782 = vshrl.u32 %v1781, 7
    %v1783 = vsub.s32 %v1780, %v1782
    %v1784 = vrot.slane %v1776, %v1783
    %v1786 = vunpack.c.l.s4 1983009808
    %v1787 = vunpack.c.0.s8 %v1786
    %v1788 = vlaneseq
    %v1789 = vshrl.u32 %v1788, 7
    %v1790 = vsub.s32 %v1787, %v1789
    %v1791 = vrot.slane %v1777, %v1790
    %v1792 = vcombine.low %v1784, %v1791
    %v1793 = vcombine.low %v1753, %v1754
    %v1794 = vcombine.low %v1755, %v1756
    %v1796 = vunpack.c.l.s4 1983009808
    %v1797 = vunpack.c.0.s8 %v1796
    %v1798 = vlaneseq
    %v1799 = vshrl.u32 %v1798, 7
    %v1800 = vsub.s32 %v1797, %v1799
    %v1801 = vrot.slane %v1793, %v1800
    %v1803 = vunpack.c.l.s4 1983009808
    %v1804 = vunpack.c.0.s8 %v1803
    %v1805 = vlaneseq
    %v1806 = vshrl.u32 %v1805, 7
    %v1807 = vsub.s32 %v1804, %v1806
    %v1808 = vrot.slane %v1794, %v1807
    %v1809 = vcombine.low %v1801, %v1808
    %v1810 = vsel %vm71, %v1792, 0
    %v1812 = vsel %vm71, %v1809, 0
    %1814 = vmatprep.subr.mxu0 0.0
    %1815 = vmatpush1.msra.mxu0 %v1757
    %1816 = vmatprep.subr.mxu0 0.0
    %1817 = vmatpush1.msra.mxu0 %v1758
    %1818 = vmatprep.subr.mxu0 0.0
    %1819 = vmatpush1.msra.mxu0 %v1759
    %1820 = vmatprep.subr.mxu0 0.0
    %1821 = vmatpush1.msra.mxu0 %v1760
    %1822 = vmatprep.subr.mxu0 0.0
    %1823 = vmatpush1.msra.mxu0 0.0
    %1824 = vmatprep.subr.mxu0 0.0
    %1825 = vmatpush1.msra.mxu0 0.0
    %1826 = vmatprep.subr.mxu0 0.0
    %1827 = vmatpush1.msra.mxu0 0.0
    %1828 = vmatprep.subr.mxu0 0.0
    %1829 = vmatpush1.msra.mxu0 0.0
    %1830 = vmatprep.subr.mxu0 0.0
    %1831 = vmatpush1.msra.mxu0 0.0
    %1832 = vmatprep.subr.mxu0 0.0
    %1833 = vmatpush1.msra.mxu0 0.0
    %1834 = vmatprep.subr.mxu0 0.0
    %1835 = vmatpush1.msra.mxu0 0.0
    %1836 = vmatprep.subr.mxu0 0.0
    %1837 = vmatpush1.msra.mxu0 0.0
    %1838 = vmatprep.subr.mxu0 0.0
    %1839 = vmatpush1.msra.mxu0 0.0
    %1840 = vmatprep.subr.mxu0 0.0
    %1841 = vmatpush1.msra.mxu0 0.0
    %1842 = vmatprep.subr.mxu0 0.0
    %1843 = vmatpush1.msra.mxu0 0.0
    %1844 = vmatprep.subr.mxu0 0.0
    %1845 = vmatpush1.msra.mxu0 0.0
    %1846 = vmatprep.subr.mxu0 0.0
    %1847 = vmatpush1.msra.mxu0 0.0
    %1848 = vmatprep.subr.mxu0 0.0
    %1849 = vmatpush1.msra.mxu0 0.0
    %1850 = vmatprep.subr.mxu0 0.0
    %1851 = vmatpush1.msra.mxu0 0.0
    %1852 = vmatprep.subr.mxu0 0.0
    %1853 = vmatpush1.msra.mxu0 0.0
    %1854 = vmatprep.subr.mxu0 0.0
    %1855 = vmatpush1.msra.mxu0 0.0
    %1856 = vmatprep.subr.mxu0 0.0
    %1857 = vmatpush1.msra.mxu0 0.0
    %1858 = vmatprep.subr.mxu0 0.0
    %1859 = vmatpush1.msra.mxu0 0.0
    %1860 = vmatprep.subr.mxu0 0.0
    %1861 = vmatpush1.msra.mxu0 0.0
    %1862 = vmatprep.subr.mxu0 0.0
    %1863 = vmatpush1.msra.mxu0 0.0
    %1864 = vmatprep.subr.mxu0 0.0
    %1865 = vmatpush1.msra.mxu0 0.0
    %1866 = vmatprep.subr.mxu0 0.0
    %1867 = vmatpush1.msra.mxu0 0.0
    %1868 = vmatprep.subr.mxu0 0.0
    %1869 = vmatpush1.msra.mxu0 0.0
    %1870 = vmatprep.subr.mxu0 0.0
    %1871 = vmatpush1.msra.mxu0 0.0
    %1872 = vmatprep.subr.mxu0 0.0
    %1873 = vmatpush1.msra.mxu0 0.0
    %1874 = vmatprep.subr.mxu0 0.0
    %1875 = vmatpush1.msra.mxu0 0.0
    %1876 = vmatprep.subr.mxu0 0.0
    %1877 = vmatpush1.msra.mxu0 0.0
    %1878 = vmatprep.mubr.f32.mxu0 0.0
    %1879 = vmatmul.mubr.f32.gmra.mrb[0].mxu0 %v1810
    %v1880 = vpop.f32.mrb[0].mxu0
    %v1881 = vadd.f32 %v1766, %v1880
    %v1882 = vpop.f32.mrb[0].mxu0
    %1883 = vmatprep.mubr.f32.mxu0 0.0
    %1884 = vmatmul.mubr.f32.gmra.mrb[0].mxu0 %v1812
    %v1885 = vpop.f32.mrb[0].mxu0
    %v1886 = vadd.f32 %v1766, %v1885
    %v1887 = vpop.f32.mrb[0].mxu0
    %1888 = vdwg.mxu0
    %v1889 = vmul.f32 %v1881, %v1881
    %v1890 = vmul.f32 %v1886, %v1886
    %v1893 = vcombine.high %v1889, %v1889
    %v1895 = vunpack.c.l.s4 1983009808
    %v1896 = vunpack.c.0.s8 %v1895
    %v1897 = vlaneseq
    %v1898 = vshrl.u32 %v1897, 7
    %v1899 = vsub.s32 %v1896, %v1898
    %v1900 = vrot.slane %v1889, %v1899
    %v1902 = vunpack.c.l.s4 1983009808
    %v1903 = vunpack.c.0.s8 %v1902
    %v1904 = vlaneseq
    %v1905 = vshrl.u32 %v1904, 7
    %v1906 = vsub.s32 %v1903, %v1905
    %v1907 = vrot.slane %v1893, %v1906
    %v1908 = vcombine.high %v1900, %v1900
    %v1909 = vcombine.high %v1907, %v1907
    %v1910 = vcombine.high %v1890, %v1890
    %v1912 = vunpack.c.l.s4 1983009808
    %v1913 = vunpack.c.0.s8 %v1912
    %v1914 = vlaneseq
    %v1915 = vshrl.u32 %v1914, 7
    %v1916 = vsub.s32 %v1913, %v1915
    %v1917 = vrot.slane %v1890, %v1916
    %v1919 = vunpack.c.l.s4 1983009808
    %v1920 = vunpack.c.0.s8 %v1919
    %v1921 = vlaneseq
    %v1922 = vshrl.u32 %v1921, 7
    %v1923 = vsub.s32 %v1920, %v1922
    %v1924 = vrot.slane %v1910, %v1923
    %v1925 = vcombine.high %v1917, %v1917
    %v1926 = vcombine.high %v1924, %v1924
    %vm1935 = vcmask 25600
    %v1936 = vsel %vm1935, %v1900, 0.0
    %v1937 = vsel %vm1935, %v1908, 0.0
    %v1938 = vadd.f32 %v1936, %v1937
    %v1939 = vsel %vm1935, %v1907, 0.0
    %v1940 = vadd.f32 %v1938, %v1939
    %v1941 = vsel %vm1935, %v1909, 0.0
    %v1942 = vadd.f32 %v1940, %v1941
    %v1943 = vsel %vm1935, %v1917, 0.0
    %v1944 = vadd.f32 %v1942, %v1943
    %v1945 = vsel %vm1935, %v1925, 0.0
    %v1946 = vadd.f32 %v1944, %v1945
    %v1947 = vsel %vm1935, %v1924, 0.0
    %v1948 = vadd.f32 %v1946, %v1947
    %v1949 = vsel %vm1935, %v1926, 0.0
    %v1950 = vadd.f32 %v1948, %v1949
    %1951 = vadd.xlane.f32.xlu0 %v1950
    %v1952 = vpop.xlane.xlu0 %1951
    %v1953 = vadd.f32 %v1952, 1e-08
    %v1954 = vrcp.pop %v1953
    %v1955 = vmul.f32 8.0, %v1954
    %v1956 = vmul.f32 %v1900, %v1955
    %v1957 = vmul.f32 %v1908, %v1955
    %v1958 = vmul.f32 %v1907, %v1955
    %v1959 = vmul.f32 %v1909, %v1955
    %v1960 = vmul.f32 %v1917, %v1955
    %v1961 = vmul.f32 %v1925, %v1955
    %v1962 = vmul.f32 %v1924, %v1955
    %v1963 = vmul.f32 %v1926, %v1955
    %1964 = vst.msk [vmem:[%s6] sm:$0x3] %vm1935, %v1956
    %1965 = vst.msk [vmem:[%s6 + $0x2] sm:$0x3] %vm1935, %v1957
    %1966 = vst.msk [vmem:[%s6 + $0x4] sm:$0x3] %vm1935, %v1958
    %1967 = vst.msk [vmem:[%s6 + $0x6] sm:$0x3] %vm1935, %v1959
    %1968 = vst.msk [vmem:[%s6 + $0x8] sm:$0x3] %vm1935, %v1960
    %1969 = vst.msk [vmem:[%s6 + $0xa] sm:$0x3] %vm1935, %v1961
    %1970 = vst.msk [vmem:[%s6 + $0xc] sm:$0x3] %vm1935, %v1962
    %1971 = vst.msk [vmem:[%s6 + $0xe] sm:$0x3] %vm1935, %v1963
    // Predicated region
    $region34: #{tpu_custom_call.1} parent=1 // pred_check
      _
    $region35: #{tpu_custom_call.1} parent=1 // pred_check_branch
      %1973 = sbr.rel (0) target = $region37
    $region36: #{tpu_custom_call.1} parent=1 // pred_region
      _
    $region37: #{tpu_custom_call.1} parent=1 // pred_fallthru
      _
    // Predicated region
    $region38: #{tpu_custom_call.1} parent=1 // pred_check
      _
    $region39: #{tpu_custom_call.1} parent=1 // pred_check_branch
      %1975 = sbr.rel (0) target = $region41
    $region40: #{tpu_custom_call.1} parent=1 // pred_region
      _
    $region41: #{tpu_custom_call.1} parent=1 // pred_fallthru
      _
    %1976 = vsyncpa [#allocation4], 1
    %1977 = vsyncpa [#allocation6], 1

</llo_original>
